<compile_context>
chip_gen: v7x
topology: tpu7x:2x2x1
jax: 0.10.0
libtpu: 0.0.40
codegen_flags: <defaults>
</compile_context>

<pallas_src>
import functools

import jax
import jax.numpy as jnp
from jax.experimental import pallas as pl
from jax.experimental.pallas import tpu as pltpu


# ----------------------------------------------------------------------------
# Pallas GEMM kernels (optionally fused bias and residual epilogues)
# ----------------------------------------------------------------------------
def _mm_kernel(a_ref, b_ref, o_ref):
    o_ref[...] = jnp.dot(a_ref[...], b_ref[...],
                         preferred_element_type=jnp.float32)


def _mm_bias_kernel(a_ref, b_ref, bias_ref, o_ref):
    o_ref[...] = (
        jnp.dot(a_ref[...], b_ref[...], preferred_element_type=jnp.float32)
        + bias_ref[...]
    )


def _mm_bias_res_kernel(a_ref, b_ref, bias_ref, r_ref, o_ref):
    o_ref[...] = (
        jnp.dot(a_ref[...], b_ref[...], preferred_element_type=jnp.float32)
        + bias_ref[...]
        + r_ref[...]
    )


def pallas_matmul(a, b, bias=None, residual=None):
    """out = a @ b [+ bias] [+ residual].

    a: (R, K), b: (K, M), bias: (R,), residual: (R, M).  Output (R, M) f32.
    The long M axis is the lane dim; it is tiled in 256-lane blocks when it is
    a multiple of 256 (grid marked "parallel" for megacore), otherwise a
    single full-array block is used (no wasteful padding of M).
    """
    R, K = a.shape
    K2, M = b.shape
    assert K == K2
    tm = 256 if (M % 256 == 0) else M
    grid = (M // tm,)

    a = a.astype(jnp.float32)
    b = b.astype(jnp.float32)
    # TODO(synk): for scaled-up channel counts, cast a/b to bf16 (keep f32
    # accumulation) and add a K grid axis with a VMEM accumulator.

    in_specs = [
        pl.BlockSpec((R, K), lambda i: (0, 0)),
        pl.BlockSpec((K, tm), lambda i: (0, i)),
    ]
    args = [a, b]
    if bias is not None:
        in_specs.append(pl.BlockSpec((R, 1), lambda i: (0, 0)))
        args.append(bias.reshape(R, 1).astype(jnp.float32))
    if residual is not None:
        in_specs.append(pl.BlockSpec((R, tm), lambda i: (0, i)))
        args.append(residual.astype(jnp.float32))

    if bias is not None and residual is not None:
        kernel = _mm_bias_res_kernel
    elif bias is not None:
        kernel = _mm_bias_kernel
    else:
        kernel = _mm_kernel

    return pl.pallas_call(
        kernel,
        out_shape=jax.ShapeDtypeStruct((R, M), jnp.float32),
        grid=grid,
        in_specs=in_specs,
        out_specs=pl.BlockSpec((R, tm), lambda i: (0, i)),
        compiler_params=pltpu.CompilerParams(
            dimension_semantics=("parallel",)
        ),
    )(*args)


# ----------------------------------------------------------------------------
# Conv / ConvTranspose lowering (channel-major layout)
# ----------------------------------------------------------------------------
def conv2d_cm(x, w, b, stride=1, pad=1, residual=None):
    """Conv2d on channel-major activations.

    x: (Cin, B, H, W); w: (Cout, Cin, kH, kW); b: (Cout,);
    residual (optional): (Cout, B, Ho, Wo) fused into the GEMM epilogue.
    Returns (Cout, B, Ho, Wo).
    """
    Cin, B, H, W = x.shape
    Cout, _, kH, kW = w.shape
    xp = jnp.pad(x, ((0, 0), (0, 0), (pad, pad), (pad, pad)))
    Hp, Wp = H + 2 * pad, W + 2 * pad
    Ho = (Hp - kH) // stride + 1
    Wo = (Wp - kW) // stride + 1

    # im2col: strided slices keep (B, Ho, Wo) contiguous/trailing, so the
    # patch matrix (Cin*kH*kW, B*Ho*Wo) needs no cross-batch relayout and the
    # GEMM output is already in the network's channel-major layout.
    cols = [xp[:, :, kh:kh + stride * Ho:stride, kw:kw + stride * Wo:stride]
            for kh in range(kH) for kw in range(kW)]
    patches = jnp.stack(cols, axis=1).reshape(Cin * kH * kW, B * Ho * Wo)

    wm = w.reshape(Cout, Cin * kH * kW)
    res = None if residual is None else residual.reshape(Cout, B * Ho * Wo)
    y = pallas_matmul(wm, patches, bias=b, residual=res)
    return y.reshape(Cout, B, Ho, Wo)


def conv_transpose2d_cm(x, wm, b, kH, kW, stride, padding, output_padding):
    """ConvTranspose2d on channel-major activations, no zero-dilation.

    x: (Cin, B, H, W); wm: (Cout*kH*kW, Cin) pre-reshaped PyTorch weight;
    b: (Cout,).  Dense GEMM on the real input, then a col2im scatter-add.
    """
    Cin, B, H, W = x.shape
    Cout = wm.shape[0] // (kH * kW)
    Hout = (H - 1) * stride - 2 * padding + kH + output_padding
    Wout = (W - 1) * stride - 2 * padding + kW + output_padding

    cols = pallas_matmul(wm, x.reshape(Cin, B * H * W))
    cols = cols.reshape(Cout, kH, kW, B, H, W)

    Hbig = (H - 1) * stride + kH + max(0, output_padding - padding)
    Wbig = (W - 1) * stride + kW + max(0, output_padding - padding)
    buf = jnp.zeros((Cout, B, Hbig, Wbig), jnp.float32)
    for kh in range(kH):
        for kw in range(kW):
            buf = buf.at[:, :,
                         kh:kh + stride * H:stride,
                         kw:kw + stride * W:stride].add(cols[:, kh, kw])
    out = buf[:, :, padding:padding + Hout, padding:padding + Wout]
    return out + b[:, None, None, None]


# ----------------------------------------------------------------------------
# Module pieces
# ----------------------------------------------------------------------------
def residual_block(x, p):
    """ResidualBlock with BN pre-folded into conv weights; the residual add
    is fused into the second conv's GEMM."""
    h = conv2d_cm(x, p["conv1_w"], p["conv1_b"], stride=1, pad=1)
    return conv2d_cm(h, p["conv2_w"], p["conv2_b"], stride=1, pad=1,
                     residual=x)


def resnet_fpn3_forward(x_nchw, P):
    # switch once to channel-major (C, B, H, W); switch back once at the end.
    x = jnp.transpose(x_nchw, (1, 0, 2, 3)).astype(jnp.float32)

    # block1 (conv+BN folded, then ResidualBlock)
    h = conv2d_cm(x, P["b1_conv_w"], P["b1_conv_b"], stride=1, pad=1)
    h = residual_block(h, P["b1_res1"])
    up1 = conv_transpose2d_cm(h, P["up1_wm"], P["up1_b"], 3, 3,
                              stride=1, padding=1, output_padding=0)

    # block2
    h = conv2d_cm(h, P["b2_conv_w"], P["b2_conv_b"], stride=2, pad=1)
    h = residual_block(h, P["b2_res1"])
    h = residual_block(h, P["b2_res2"])
    up2 = conv_transpose2d_cm(h, P["up2_wm"], P["up2_b"], 3, 3,
                              stride=2, padding=1, output_padding=1)

    # block3
    h = conv2d_cm(h, P["b3_conv_w"], P["b3_conv_b"], stride=2, pad=1)
    h = residual_block(h, P["b3_res1"])
    h = residual_block(h, P["b3_res2"])
    up3 = conv_transpose2d_cm(h, P["up3_wm"], P["up3_b"], 3, 3,
                              stride=4, padding=1, output_padding=3)

    out = jnp.concatenate([up1, up2, up3], axis=0)   # (6C, B, H, W)
    return jnp.transpose(out, (1, 0, 2, 3))          # NCHW


# ----------------------------------------------------------------------------
# Parameters: raw (conv + eval-mode BN stats) and BN-folded prep
# ----------------------------------------------------------------------------
def init_params(num_channels, key):
    keys = iter(jax.random.split(key, 128))

    def nrm(shape, scale=0.1):
        return (scale * jax.random.normal(next(keys), shape)).astype(jnp.float32)

    def bn(c):
        return (1.0 + nrm((c,), 0.05), nrm((c,), 0.05),
                nrm((c,), 0.05), 1.0 + jnp.abs(nrm((c,), 0.05)))

    def res(c):
        return dict(conv1_w=nrm((c, c, 3, 3)), conv1_b=nrm((c,)), bn1=bn(c),
                    conv2_w=nrm((c, c, 3, 3)), conv2_b=nrm((c,)), bn2=bn(c))

    c = num_channels
    return dict(
        b1_conv_w=nrm((c, c, 3, 3)), b1_conv_b=nrm((c,)), b1_bn=bn(c),
        b1_res1=res(c),
        b2_conv_w=nrm((c, c, 3, 3)), b2_conv_b=nrm((c,)), b2_bn=bn(c),
        b2_res1=res(c), b2_res2=res(c),
        b3_conv_w=nrm((2 * c, c, 3, 3)), b3_conv_b=nrm((2 * c,)),
        b3_bn=bn(2 * c),
        b3_res1=res(2 * c), b3_res2=res(2 * c),
        # PyTorch ConvTranspose2d weight layout: (in, out, kH, kW)
        up1_w=nrm((c, 2 * c, 3, 3)), up1_b=nrm((2 * c,)),
        up2_w=nrm((c, 2 * c, 3, 3)), up2_b=nrm((2 * c,)),
        up3_w=nrm((2 * c, 2 * c, 3, 3)), up3_b=nrm((2 * c,)),
    )


def prepare_params(raw, eps=1e-5):
    """Fold eval-mode BatchNorm into the preceding conv (mathematically
    identical), and pre-reshape ConvTranspose weights to GEMM form."""

    def fold(w, b, bnp):
        gamma, beta, mean, var = bnp
        s = gamma * jax.lax.rsqrt(var + eps)
        return (w * s[:, None, None, None]).astype(jnp.float32), \
               ((b - mean) * s + beta).astype(jnp.float32)

    def fold_res(r):
        w1, b1 = fold(r["conv1_w"], r["conv1_b"], r["bn1"])
        w2, b2 = fold(r["conv2_w"], r["conv2_b"], r["bn2"])
        return dict(conv1_w=w1, conv1_b=b1, conv2_w=w2, conv2_b=b2)

    def prep_up(w):
        ci, co, kh, kw = w.shape
        return jnp.transpose(w, (1, 2, 3, 0)).reshape(co * kh * kw, ci)

    P = {}
    for blk in ("b1", "b2", "b3"):
        P[f"{blk}_conv_w"], P[f"{blk}_conv_b"] = fold(
            raw[f"{blk}_conv_w"], raw[f"{blk}_conv_b"], raw[f"{blk}_bn"])
    P["b1_res1"] = fold_res(raw["b1_res1"])
    for blk in ("b2", "b3"):
        P[f"{blk}_res1"] = fold_res(raw[f"{blk}_res1"])
        P[f"{blk}_res2"] = fold_res(raw[f"{blk}_res2"])
    for u in ("up1", "up2", "up3"):
        P[f"{u}_wm"] = prep_up(raw[f"{u}_w"]).astype(jnp.float32)
        P[f"{u}_b"] = raw[f"{u}_b"].astype(jnp.float32)
    return P


# ----------------------------------------------------------------------------
if __name__ == "__main__":
    num_channels = 4
    B, H, W = 2, 16, 16

    key = jax.random.PRNGKey(0)
    k_params, k_x = jax.random.split(key)
    raw_params = init_params(num_channels, k_params)
    P = jax.tree_util.tree_map(jnp.asarray, prepare_params(raw_params))
    x = jax.random.normal(k_x, (B, num_channels, H, W), dtype=jnp.float32)

    fwd = jax.jit(resnet_fpn3_forward)
    out = jax.block_until_ready(fwd(x, P))

    expected_shape = (B, 6 * num_channels, H, W)  # 2C + 2C + 2C channels
    assert out.shape == expected_shape, (out.shape, expected_shape)
    assert out.dtype == jnp.float32
    assert bool(jnp.all(jnp.isfinite(out)))
    print("KERNEL_OK")
</pallas_src>

<mosaic_0001>
module attributes {stable_mosaic.version = 11 : i64} {
  func.func @_mm_bias_kernel(%arg0: i32, %arg1: memref<4x36xf32, #tpu.memory_space<vmem>>, %arg2: memref<36x256xf32, #tpu.memory_space<vmem>>, %arg3: memref<4x1xf32, #tpu.memory_space<vmem>>, %arg4: memref<4x256xf32, #tpu.memory_space<vmem>>) attributes {dimension_semantics = [#tpu.dimension_semantics<parallel>], iteration_bounds = array<i64: 2>, scalar_prefetch = 0 : i64, scratch_operands = 0 : i64, tpu.core_type = #tpu.core_type<tc>, window_params = [{pipeline_mode = #tpu.pipeline_mode<synchronous>, transform_indices = @transform_0, window_bounds = array<i64: 4, 36>}, {transform_indices = @transform_1, window_bounds = array<i64: 36, 256>}, {pipeline_mode = #tpu.pipeline_mode<synchronous>, transform_indices = @transform_2, window_bounds = array<i64: 4, 1>}, {transform_indices = @transform_3, window_bounds = array<i64: 4, 256>}]} {
    %c0 = arith.constant 0 : index
    %c0_0 = arith.constant 0 : index
    %0 = vector.load %arg1[%c0, %c0_0] : memref<4x36xf32, #tpu.memory_space<vmem>>, vector<4x36xf32>
    %c0_1 = arith.constant 0 : index
    %c0_2 = arith.constant 0 : index
    %1 = vector.load %arg2[%c0_1, %c0_2] : memref<36x256xf32, #tpu.memory_space<vmem>>, vector<36x256xf32>
    %cst = arith.constant dense<0.000000e+00> : vector<4x256xf32>
    %2 = tpu.matmul %0, %1, %cst {dimension_numbers = #tpu.dot_dimension_numbers<[1], [0], [0], [1], [0, 0, 1, 1], [], []>} : vector<4x36xf32>, vector<36x256xf32>, vector<4x256xf32> -> vector<4x256xf32>
    %c0_3 = arith.constant 0 : index
    %c0_4 = arith.constant 0 : index
    %3 = vector.load %arg3[%c0_3, %c0_4] : memref<4x1xf32, #tpu.memory_space<vmem>>, vector<4x1xf32>
    %4 = vector.broadcast %3 : vector<4x1xf32> to vector<4x256xf32>
    %5 = arith.addf %2, %4 : vector<4x256xf32>
    %c0_5 = arith.constant 0 : index
    %c0_6 = arith.constant 0 : index
    %6 = vector.load %arg4[%c0_5, %c0_6] : memref<4x256xf32, #tpu.memory_space<vmem>>, vector<4x256xf32>
    tpu.vector_store %arg4[%c0_5, %c0_6], %5 {strides = array<i32>} : memref<4x256xf32, #tpu.memory_space<vmem>>, vector<4x256xf32>,
    return
  }
  func.func @transform_0(%arg0: i32) -> (i32, i32) {
    %c0_i32 = arith.constant 0 : i32
    %c0_i32_0 = arith.constant 0 : i32
    %c0_i32_1 = arith.constant 0 : i32
    return %c0_i32, %c0_i32_0 : i32, i32
  }
  func.func @transform_1(%arg0: i32) -> (i32, i32) {
    %c0_i32 = arith.constant 0 : i32
    %c0_i32_0 = arith.constant 0 : i32
    return %c0_i32, %arg0 : i32, i32
  }
  func.func @transform_2(%arg0: i32) -> (i32, i32) {
    %c0_i32 = arith.constant 0 : i32
    %c0_i32_0 = arith.constant 0 : i32
    %c0_i32_1 = arith.constant 0 : i32
    return %c0_i32, %c0_i32_0 : i32, i32
  }
  func.func @transform_3(%arg0: i32) -> (i32, i32) {
    %c0_i32 = arith.constant 0 : i32
    %c0_i32_0 = arith.constant 0 : i32
    return %c0_i32, %arg0 : i32, i32
  }
}

module attributes {stable_mosaic.version = 11 : i64} {
  func.func @_mm_bias_res_kernel(%arg0: i32, %arg1: memref<4x36xf32, #tpu.memory_space<vmem>>, %arg2: memref<36x256xf32, #tpu.memory_space<vmem>>, %arg3: memref<4x1xf32, #tpu.memory_space<vmem>>, %arg4: memref<4x256xf32, #tpu.memory_space<vmem>>, %arg5: memref<4x256xf32, #tpu.memory_space<vmem>>) attributes {dimension_semantics = [#tpu.dimension_semantics<parallel>], iteration_bounds = array<i64: 2>, scalar_prefetch = 0 : i64, scratch_operands = 0 : i64, tpu.core_type = #tpu.core_type<tc>, window_params = [{pipeline_mode = #tpu.pipeline_mode<synchronous>, transform_indices = @transform_0, window_bounds = array<i64: 4, 36>}, {transform_indices = @transform_1, window_bounds = array<i64: 36, 256>}, {pipeline_mode = #tpu.pipeline_mode<synchronous>, transform_indices = @transform_2, window_bounds = array<i64: 4, 1>}, {transform_indices = @transform_3, window_bounds = array<i64: 4, 256>}, {transform_indices = @transform_4, window_bounds = array<i64: 4, 256>}]} {
    %c0 = arith.constant 0 : index
    %c0_0 = arith.constant 0 : index
    %0 = vector.load %arg1[%c0, %c0_0] : memref<4x36xf32, #tpu.memory_space<vmem>>, vector<4x36xf32>
    %c0_1 = arith.constant 0 : index
    %c0_2 = arith.constant 0 : index
    %1 = vector.load %arg2[%c0_1, %c0_2] : memref<36x256xf32, #tpu.memory_space<vmem>>, vector<36x256xf32>
    %cst = arith.constant dense<0.000000e+00> : vector<4x256xf32>
    %2 = tpu.matmul %0, %1, %cst {dimension_numbers = #tpu.dot_dimension_numbers<[1], [0], [0], [1], [0, 0, 1, 1], [], []>} : vector<4x36xf32>, vector<36x256xf32>, vector<4x256xf32> -> vector<4x256xf32>
    %c0_3 = arith.constant 0 : index
    %c0_4 = arith.constant 0 : index
    %3 = vector.load %arg3[%c0_3, %c0_4] : memref<4x1xf32, #tpu.memory_space<vmem>>, vector<4x1xf32>
    %4 = vector.broadcast %3 : vector<4x1xf32> to vector<4x256xf32>
    %5 = arith.addf %2, %4 : vector<4x256xf32>
    %c0_5 = arith.constant 0 : index
    %c0_6 = arith.constant 0 : index
    %6 = vector.load %arg4[%c0_5, %c0_6] : memref<4x256xf32, #tpu.memory_space<vmem>>, vector<4x256xf32>
    %7 = arith.addf %5, %6 : vector<4x256xf32>
    %c0_7 = arith.constant 0 : index
    %c0_8 = arith.constant 0 : index
    %8 = vector.load %arg5[%c0_7, %c0_8] : memref<4x256xf32, #tpu.memory_space<vmem>>, vector<4x256xf32>
    tpu.vector_store %arg5[%c0_7, %c0_8], %7 {strides = array<i32>} : memref<4x256xf32, #tpu.memory_space<vmem>>, vector<4x256xf32>,
    return
  }
  func.func @transform_0(%arg0: i32) -> (i32, i32) {
    %c0_i32 = arith.constant 0 : i32
    %c0_i32_0 = arith.constant 0 : i32
    %c0_i32_1 = arith.constant 0 : i32
    return %c0_i32, %c0_i32_0 : i32, i32
  }
  func.func @transform_1(%arg0: i32) -> (i32, i32) {
    %c0_i32 = arith.constant 0 : i32
    %c0_i32_0 = arith.constant 0 : i32
    return %c0_i32, %arg0 : i32, i32
  }
  func.func @transform_2(%arg0: i32) -> (i32, i32) {
    %c0_i32 = arith.constant 0 : i32
    %c0_i32_0 = arith.constant 0 : i32
    %c0_i32_1 = arith.constant 0 : i32
    return %c0_i32, %c0_i32_0 : i32, i32
  }
  func.func @transform_3(%arg0: i32) -> (i32, i32) {
    %c0_i32 = arith.constant 0 : i32
    %c0_i32_0 = arith.constant 0 : i32
    return %c0_i32, %arg0 : i32, i32
  }
  func.func @transform_4(%arg0: i32) -> (i32, i32) {
    %c0_i32 = arith.constant 0 : i32
    %c0_i32_0 = arith.constant 0 : i32
    return %c0_i32, %arg0 : i32, i32
  }
}

module attributes {stable_mosaic.version = 11 : i64} {
  func.func @_mm_kernel(%arg0: i32, %arg1: memref<72x4xf32, #tpu.memory_space<vmem>>, %arg2: memref<4x256xf32, #tpu.memory_space<vmem>>, %arg3: memref<72x256xf32, #tpu.memory_space<vmem>>) attributes {dimension_semantics = [#tpu.dimension_semantics<parallel>], iteration_bounds = array<i64: 2>, scalar_prefetch = 0 : i64, scratch_operands = 0 : i64, tpu.core_type = #tpu.core_type<tc>, window_params = [{pipeline_mode = #tpu.pipeline_mode<synchronous>, transform_indices = @transform_0, window_bounds = array<i64: 72, 4>}, {transform_indices = @transform_1, window_bounds = array<i64: 4, 256>}, {transform_indices = @transform_2, window_bounds = array<i64: 72, 256>}]} {
    %c0 = arith.constant 0 : index
    %c0_0 = arith.constant 0 : index
    %0 = vector.load %arg1[%c0, %c0_0] : memref<72x4xf32, #tpu.memory_space<vmem>>, vector<72x4xf32>
    %c0_1 = arith.constant 0 : index
    %c0_2 = arith.constant 0 : index
    %1 = vector.load %arg2[%c0_1, %c0_2] : memref<4x256xf32, #tpu.memory_space<vmem>>, vector<4x256xf32>
    %cst = arith.constant dense<0.000000e+00> : vector<72x256xf32>
    %2 = tpu.matmul %0, %1, %cst {dimension_numbers = #tpu.dot_dimension_numbers<[1], [0], [0], [1], [0, 0, 1, 1], [], []>} : vector<72x4xf32>, vector<4x256xf32>, vector<72x256xf32> -> vector<72x256xf32>
    %c0_3 = arith.constant 0 : index
    %c0_4 = arith.constant 0 : index
    %3 = vector.load %arg3[%c0_3, %c0_4] : memref<72x256xf32, #tpu.memory_space<vmem>>, vector<72x256xf32>
    tpu.vector_store %arg3[%c0_3, %c0_4], %2 {strides = array<i32>} : memref<72x256xf32, #tpu.memory_space<vmem>>, vector<72x256xf32>,
    return
  }
  func.func @transform_0(%arg0: i32) -> (i32, i32) {
    %c0_i32 = arith.constant 0 : i32
    %c0_i32_0 = arith.constant 0 : i32
    %c0_i32_1 = arith.constant 0 : i32
    return %c0_i32, %c0_i32_0 : i32, i32
  }
  func.func @transform_1(%arg0: i32) -> (i32, i32) {
    %c0_i32 = arith.constant 0 : i32
    %c0_i32_0 = arith.constant 0 : i32
    return %c0_i32, %arg0 : i32, i32
  }
  func.func @transform_2(%arg0: i32) -> (i32, i32) {
    %c0_i32 = arith.constant 0 : i32
    %c0_i32_0 = arith.constant 0 : i32
    return %c0_i32, %arg0 : i32, i32
  }
}

module attributes {stable_mosaic.version = 11 : i64} {
  func.func @_mm_bias_kernel(%arg0: i32, %arg1: memref<4x36xf32, #tpu.memory_space<vmem>>, %arg2: memref<36x128xf32, #tpu.memory_space<vmem>>, %arg3: memref<4x1xf32, #tpu.memory_space<vmem>>, %arg4: memref<4x128xf32, #tpu.memory_space<vmem>>) attributes {dimension_semantics = [#tpu.dimension_semantics<parallel>], iteration_bounds = array<i64: 1>, scalar_prefetch = 0 : i64, scratch_operands = 0 : i64, tpu.core_type = #tpu.core_type<tc>, window_params = [{pipeline_mode = #tpu.pipeline_mode<synchronous>, transform_indices = @transform_0, window_bounds = array<i64: 4, 36>}, {transform_indices = @transform_1, window_bounds = array<i64: 36, 128>}, {pipeline_mode = #tpu.pipeline_mode<synchronous>, transform_indices = @transform_2, window_bounds = array<i64: 4, 1>}, {transform_indices = @transform_3, window_bounds = array<i64: 4, 128>}]} {
    %c0 = arith.constant 0 : index
    %c0_0 = arith.constant 0 : index
    %0 = vector.load %arg1[%c0, %c0_0] : memref<4x36xf32, #tpu.memory_space<vmem>>, vector<4x36xf32>
    %c0_1 = arith.constant 0 : index
    %c0_2 = arith.constant 0 : index
    %1 = vector.load %arg2[%c0_1, %c0_2] : memref<36x128xf32, #tpu.memory_space<vmem>>, vector<36x128xf32>
    %cst = arith.constant dense<0.000000e+00> : vector<4x128xf32>
    %2 = tpu.matmul %0, %1, %cst {dimension_numbers = #tpu.dot_dimension_numbers<[1], [0], [0], [1], [0, 0, 1, 1], [], []>} : vector<4x36xf32>, vector<36x128xf32>, vector<4x128xf32> -> vector<4x128xf32>
    %c0_3 = arith.constant 0 : index
    %c0_4 = arith.constant 0 : index
    %3 = vector.load %arg3[%c0_3, %c0_4] : memref<4x1xf32, #tpu.memory_space<vmem>>, vector<4x1xf32>
    %4 = vector.broadcast %3 : vector<4x1xf32> to vector<4x128xf32>
    %5 = arith.addf %2, %4 : vector<4x128xf32>
    %c0_5 = arith.constant 0 : index
    %c0_6 = arith.constant 0 : index
    %6 = vector.load %arg4[%c0_5, %c0_6] : memref<4x128xf32, #tpu.memory_space<vmem>>, vector<4x128xf32>
    tpu.vector_store %arg4[%c0_5, %c0_6], %5 {strides = array<i32>} : memref<4x128xf32, #tpu.memory_space<vmem>>, vector<4x128xf32>,
    return
  }
  func.func @transform_0(%arg0: i32) -> (i32, i32) {
    %c0_i32 = arith.constant 0 : i32
    %c0_i32_0 = arith.constant 0 : i32
    %c0_i32_1 = arith.constant 0 : i32
    return %c0_i32, %c0_i32_0 : i32, i32
  }
  func.func @transform_1(%arg0: i32) -> (i32, i32) {
    %c0_i32 = arith.constant 0 : i32
    %c0_i32_0 = arith.constant 0 : i32
    return %c0_i32, %arg0 : i32, i32
  }
  func.func @transform_2(%arg0: i32) -> (i32, i32) {
    %c0_i32 = arith.constant 0 : i32
    %c0_i32_0 = arith.constant 0 : i32
    %c0_i32_1 = arith.constant 0 : i32
    return %c0_i32, %c0_i32_0 : i32, i32
  }
  func.func @transform_3(%arg0: i32) -> (i32, i32) {
    %c0_i32 = arith.constant 0 : i32
    %c0_i32_0 = arith.constant 0 : i32
    return %c0_i32, %arg0 : i32, i32
  }
}

module attributes {stable_mosaic.version = 11 : i64} {
  func.func @_mm_kernel(%arg0: i32, %arg1: memref<72x4xf32, #tpu.memory_space<vmem>>, %arg2: memref<4x128xf32, #tpu.memory_space<vmem>>, %arg3: memref<72x128xf32, #tpu.memory_space<vmem>>) attributes {dimension_semantics = [#tpu.dimension_semantics<parallel>], iteration_bounds = array<i64: 1>, scalar_prefetch = 0 : i64, scratch_operands = 0 : i64, tpu.core_type = #tpu.core_type<tc>, window_params = [{pipeline_mode = #tpu.pipeline_mode<synchronous>, transform_indices = @transform_0, window_bounds = array<i64: 72, 4>}, {transform_indices = @transform_1, window_bounds = array<i64: 4, 128>}, {transform_indices = @transform_2, window_bounds = array<i64: 72, 128>}]} {
    %c0 = arith.constant 0 : index
    %c0_0 = arith.constant 0 : index
    %0 = vector.load %arg1[%c0, %c0_0] : memref<72x4xf32, #tpu.memory_space<vmem>>, vector<72x4xf32>
    %c0_1 = arith.constant 0 : index
    %c0_2 = arith.constant 0 : index
    %1 = vector.load %arg2[%c0_1, %c0_2] : memref<4x128xf32, #tpu.memory_space<vmem>>, vector<4x128xf32>
    %cst = arith.constant dense<0.000000e+00> : vector<72x128xf32>
    %2 = tpu.matmul %0, %1, %cst {dimension_numbers = #tpu.dot_dimension_numbers<[1], [0], [0], [1], [0, 0, 1, 1], [], []>} : vector<72x4xf32>, vector<4x128xf32>, vector<72x128xf32> -> vector<72x128xf32>
    %c0_3 = arith.constant 0 : index
    %c0_4 = arith.constant 0 : index
    %3 = vector.load %arg3[%c0_3, %c0_4] : memref<72x128xf32, #tpu.memory_space<vmem>>, vector<72x128xf32>
    tpu.vector_store %arg3[%c0_3, %c0_4], %2 {strides = array<i32>} : memref<72x128xf32, #tpu.memory_space<vmem>>, vector<72x128xf32>,
    return
  }
  func.func @transform_0(%arg0: i32) -> (i32, i32) {
    %c0_i32 = arith.constant 0 : i32
    %c0_i32_0 = arith.constant 0 : i32
    %c0_i32_1 = arith.constant 0 : i32
    return %c0_i32, %c0_i32_0 : i32, i32
  }
  func.func @transform_1(%arg0: i32) -> (i32, i32) {
    %c0_i32 = arith.constant 0 : i32
    %c0_i32_0 = arith.constant 0 : i32
    return %c0_i32, %arg0 : i32, i32
  }
  func.func @transform_2(%arg0: i32) -> (i32, i32) {
    %c0_i32 = arith.constant 0 : i32
    %c0_i32_0 = arith.constant 0 : i32
    return %c0_i32, %arg0 : i32, i32
  }
}

module attributes {stable_mosaic.version = 11 : i64} {
  func.func @_mm_bias_res_kernel(%arg0: i32, %arg1: memref<4x36xf32, #tpu.memory_space<vmem>>, %arg2: memref<36x128xf32, #tpu.memory_space<vmem>>, %arg3: memref<4x1xf32, #tpu.memory_space<vmem>>, %arg4: memref<4x128xf32, #tpu.memory_space<vmem>>, %arg5: memref<4x128xf32, #tpu.memory_space<vmem>>) attributes {dimension_semantics = [#tpu.dimension_semantics<parallel>], iteration_bounds = array<i64: 1>, scalar_prefetch = 0 : i64, scratch_operands = 0 : i64, tpu.core_type = #tpu.core_type<tc>, window_params = [{pipeline_mode = #tpu.pipeline_mode<synchronous>, transform_indices = @transform_0, window_bounds = array<i64: 4, 36>}, {transform_indices = @transform_1, window_bounds = array<i64: 36, 128>}, {pipeline_mode = #tpu.pipeline_mode<synchronous>, transform_indices = @transform_2, window_bounds = array<i64: 4, 1>}, {transform_indices = @transform_3, window_bounds = array<i64: 4, 128>}, {transform_indices = @transform_4, window_bounds = array<i64: 4, 128>}]} {
    %c0 = arith.constant 0 : index
    %c0_0 = arith.constant 0 : index
    %0 = vector.load %arg1[%c0, %c0_0] : memref<4x36xf32, #tpu.memory_space<vmem>>, vector<4x36xf32>
    %c0_1 = arith.constant 0 : index
    %c0_2 = arith.constant 0 : index
    %1 = vector.load %arg2[%c0_1, %c0_2] : memref<36x128xf32, #tpu.memory_space<vmem>>, vector<36x128xf32>
    %cst = arith.constant dense<0.000000e+00> : vector<4x128xf32>
    %2 = tpu.matmul %0, %1, %cst {dimension_numbers = #tpu.dot_dimension_numbers<[1], [0], [0], [1], [0, 0, 1, 1], [], []>} : vector<4x36xf32>, vector<36x128xf32>, vector<4x128xf32> -> vector<4x128xf32>
    %c0_3 = arith.constant 0 : index
    %c0_4 = arith.constant 0 : index
    %3 = vector.load %arg3[%c0_3, %c0_4] : memref<4x1xf32, #tpu.memory_space<vmem>>, vector<4x1xf32>
    %4 = vector.broadcast %3 : vector<4x1xf32> to vector<4x128xf32>
    %5 = arith.addf %2, %4 : vector<4x128xf32>
    %c0_5 = arith.constant 0 : index
    %c0_6 = arith.constant 0 : index
    %6 = vector.load %arg4[%c0_5, %c0_6] : memref<4x128xf32, #tpu.memory_space<vmem>>, vector<4x128xf32>
    %7 = arith.addf %5, %6 : vector<4x128xf32>
    %c0_7 = arith.constant 0 : index
    %c0_8 = arith.constant 0 : index
    %8 = vector.load %arg5[%c0_7, %c0_8] : memref<4x128xf32, #tpu.memory_space<vmem>>, vector<4x128xf32>
    tpu.vector_store %arg5[%c0_7, %c0_8], %7 {strides = array<i32>} : memref<4x128xf32, #tpu.memory_space<vmem>>, vector<4x128xf32>,
    return
  }
  func.func @transform_0(%arg0: i32) -> (i32, i32) {
    %c0_i32 = arith.constant 0 : i32
    %c0_i32_0 = arith.constant 0 : i32
    %c0_i32_1 = arith.constant 0 : i32
    return %c0_i32, %c0_i32_0 : i32, i32
  }
  func.func @transform_1(%arg0: i32) -> (i32, i32) {
    %c0_i32 = arith.constant 0 : i32
    %c0_i32_0 = arith.constant 0 : i32
    return %c0_i32, %arg0 : i32, i32
  }
  func.func @transform_2(%arg0: i32) -> (i32, i32) {
    %c0_i32 = arith.constant 0 : i32
    %c0_i32_0 = arith.constant 0 : i32
    %c0_i32_1 = arith.constant 0 : i32
    return %c0_i32, %c0_i32_0 : i32, i32
  }
  func.func @transform_3(%arg0: i32) -> (i32, i32) {
    %c0_i32 = arith.constant 0 : i32
    %c0_i32_0 = arith.constant 0 : i32
    return %c0_i32, %arg0 : i32, i32
  }
  func.func @transform_4(%arg0: i32) -> (i32, i32) {
    %c0_i32 = arith.constant 0 : i32
    %c0_i32_0 = arith.constant 0 : i32
    return %c0_i32, %arg0 : i32, i32
  }
}

module attributes {stable_mosaic.version = 11 : i64} {
  func.func @_mm_bias_kernel(%arg0: i32, %arg1: memref<8x36xf32, #tpu.memory_space<vmem>>, %arg2: memref<36x32xf32, #tpu.memory_space<vmem>>, %arg3: memref<8x1xf32, #tpu.memory_space<vmem>>, %arg4: memref<8x32xf32, #tpu.memory_space<vmem>>) attributes {dimension_semantics = [#tpu.dimension_semantics<parallel>], iteration_bounds = array<i64: 1>, scalar_prefetch = 0 : i64, scratch_operands = 0 : i64, tpu.core_type = #tpu.core_type<tc>, window_params = [{pipeline_mode = #tpu.pipeline_mode<synchronous>, transform_indices = @transform_0, window_bounds = array<i64: 8, 36>}, {transform_indices = @transform_1, window_bounds = array<i64: 36, 32>}, {pipeline_mode = #tpu.pipeline_mode<synchronous>, transform_indices = @transform_2, window_bounds = array<i64: 8, 1>}, {transform_indices = @transform_3, window_bounds = array<i64: 8, 32>}]} {
    %c0 = arith.constant 0 : index
    %c0_0 = arith.constant 0 : index
    %0 = vector.load %arg1[%c0, %c0_0] : memref<8x36xf32, #tpu.memory_space<vmem>>, vector<8x36xf32>
    %c0_1 = arith.constant 0 : index
    %c0_2 = arith.constant 0 : index
    %1 = vector.load %arg2[%c0_1, %c0_2] : memref<36x32xf32, #tpu.memory_space<vmem>>, vector<36x32xf32>
    %cst = arith.constant dense<0.000000e+00> : vector<8x32xf32>
    %2 = tpu.matmul %0, %1, %cst {dimension_numbers = #tpu.dot_dimension_numbers<[1], [0], [0], [1], [0, 0, 1, 1], [], []>} : vector<8x36xf32>, vector<36x32xf32>, vector<8x32xf32> -> vector<8x32xf32>
    %c0_3 = arith.constant 0 : index
    %c0_4 = arith.constant 0 : index
    %3 = vector.load %arg3[%c0_3, %c0_4] : memref<8x1xf32, #tpu.memory_space<vmem>>, vector<8x1xf32>
    %4 = vector.broadcast %3 : vector<8x1xf32> to vector<8x32xf32>
    %5 = arith.addf %2, %4 : vector<8x32xf32>
    %c0_5 = arith.constant 0 : index
    %c0_6 = arith.constant 0 : index
    %6 = vector.load %arg4[%c0_5, %c0_6] : memref<8x32xf32, #tpu.memory_space<vmem>>, vector<8x32xf32>
    tpu.vector_store %arg4[%c0_5, %c0_6], %5 {strides = array<i32>} : memref<8x32xf32, #tpu.memory_space<vmem>>, vector<8x32xf32>,
    return
  }
  func.func @transform_0(%arg0: i32) -> (i32, i32) {
    %c0_i32 = arith.constant 0 : i32
    %c0_i32_0 = arith.constant 0 : i32
    %c0_i32_1 = arith.constant 0 : i32
    return %c0_i32, %c0_i32_0 : i32, i32
  }
  func.func @transform_1(%arg0: i32) -> (i32, i32) {
    %c0_i32 = arith.constant 0 : i32
    %c0_i32_0 = arith.constant 0 : i32
    return %c0_i32, %arg0 : i32, i32
  }
  func.func @transform_2(%arg0: i32) -> (i32, i32) {
    %c0_i32 = arith.constant 0 : i32
    %c0_i32_0 = arith.constant 0 : i32
    %c0_i32_1 = arith.constant 0 : i32
    return %c0_i32, %c0_i32_0 : i32, i32
  }
  func.func @transform_3(%arg0: i32) -> (i32, i32) {
    %c0_i32 = arith.constant 0 : i32
    %c0_i32_0 = arith.constant 0 : i32
    return %c0_i32, %arg0 : i32, i32
  }
}

module attributes {stable_mosaic.version = 11 : i64} {
  func.func @_mm_bias_res_kernel(%arg0: i32, %arg1: memref<8x72xf32, #tpu.memory_space<vmem>>, %arg2: memref<72x32xf32, #tpu.memory_space<vmem>>, %arg3: memref<8x1xf32, #tpu.memory_space<vmem>>, %arg4: memref<8x32xf32, #tpu.memory_space<vmem>>, %arg5: memref<8x32xf32, #tpu.memory_space<vmem>>) attributes {dimension_semantics = [#tpu.dimension_semantics<parallel>], iteration_bounds = array<i64: 1>, scalar_prefetch = 0 : i64, scratch_operands = 0 : i64, tpu.core_type = #tpu.core_type<tc>, window_params = [{pipeline_mode = #tpu.pipeline_mode<synchronous>, transform_indices = @transform_0, window_bounds = array<i64: 8, 72>}, {transform_indices = @transform_1, window_bounds = array<i64: 72, 32>}, {pipeline_mode = #tpu.pipeline_mode<synchronous>, transform_indices = @transform_2, window_bounds = array<i64: 8, 1>}, {transform_indices = @transform_3, window_bounds = array<i64: 8, 32>}, {transform_indices = @transform_4, window_bounds = array<i64: 8, 32>}]} {
    %c0 = arith.constant 0 : index
    %c0_0 = arith.constant 0 : index
    %0 = vector.load %arg1[%c0, %c0_0] : memref<8x72xf32, #tpu.memory_space<vmem>>, vector<8x72xf32>
    %c0_1 = arith.constant 0 : index
    %c0_2 = arith.constant 0 : index
    %1 = vector.load %arg2[%c0_1, %c0_2] : memref<72x32xf32, #tpu.memory_space<vmem>>, vector<72x32xf32>
    %cst = arith.constant dense<0.000000e+00> : vector<8x32xf32>
    %2 = tpu.matmul %0, %1, %cst {dimension_numbers = #tpu.dot_dimension_numbers<[1], [0], [0], [1], [0, 0, 1, 1], [], []>} : vector<8x72xf32>, vector<72x32xf32>, vector<8x32xf32> -> vector<8x32xf32>
    %c0_3 = arith.constant 0 : index
    %c0_4 = arith.constant 0 : index
    %3 = vector.load %arg3[%c0_3, %c0_4] : memref<8x1xf32, #tpu.memory_space<vmem>>, vector<8x1xf32>
    %4 = vector.broadcast %3 : vector<8x1xf32> to vector<8x32xf32>
    %5 = arith.addf %2, %4 : vector<8x32xf32>
    %c0_5 = arith.constant 0 : index
    %c0_6 = arith.constant 0 : index
    %6 = vector.load %arg4[%c0_5, %c0_6] : memref<8x32xf32, #tpu.memory_space<vmem>>, vector<8x32xf32>
    %7 = arith.addf %5, %6 : vector<8x32xf32>
    %c0_7 = arith.constant 0 : index
    %c0_8 = arith.constant 0 : index
    %8 = vector.load %arg5[%c0_7, %c0_8] : memref<8x32xf32, #tpu.memory_space<vmem>>, vector<8x32xf32>
    tpu.vector_store %arg5[%c0_7, %c0_8], %7 {strides = array<i32>} : memref<8x32xf32, #tpu.memory_space<vmem>>, vector<8x32xf32>,
    return
  }
  func.func @transform_0(%arg0: i32) -> (i32, i32) {
    %c0_i32 = arith.constant 0 : i32
    %c0_i32_0 = arith.constant 0 : i32
    %c0_i32_1 = arith.constant 0 : i32
    return %c0_i32, %c0_i32_0 : i32, i32
  }
  func.func @transform_1(%arg0: i32) -> (i32, i32) {
    %c0_i32 = arith.constant 0 : i32
    %c0_i32_0 = arith.constant 0 : i32
    return %c0_i32, %arg0 : i32, i32
  }
  func.func @transform_2(%arg0: i32) -> (i32, i32) {
    %c0_i32 = arith.constant 0 : i32
    %c0_i32_0 = arith.constant 0 : i32
    %c0_i32_1 = arith.constant 0 : i32
    return %c0_i32, %c0_i32_0 : i32, i32
  }
  func.func @transform_3(%arg0: i32) -> (i32, i32) {
    %c0_i32 = arith.constant 0 : i32
    %c0_i32_0 = arith.constant 0 : i32
    return %c0_i32, %arg0 : i32, i32
  }
  func.func @transform_4(%arg0: i32) -> (i32, i32) {
    %c0_i32 = arith.constant 0 : i32
    %c0_i32_0 = arith.constant 0 : i32
    return %c0_i32, %arg0 : i32, i32
  }
}

module attributes {stable_mosaic.version = 11 : i64} {
  func.func @_mm_bias_kernel(%arg0: i32, %arg1: memref<8x72xf32, #tpu.memory_space<vmem>>, %arg2: memref<72x32xf32, #tpu.memory_space<vmem>>, %arg3: memref<8x1xf32, #tpu.memory_space<vmem>>, %arg4: memref<8x32xf32, #tpu.memory_space<vmem>>) attributes {dimension_semantics = [#tpu.dimension_semantics<parallel>], iteration_bounds = array<i64: 1>, scalar_prefetch = 0 : i64, scratch_operands = 0 : i64, tpu.core_type = #tpu.core_type<tc>, window_params = [{pipeline_mode = #tpu.pipeline_mode<synchronous>, transform_indices = @transform_0, window_bounds = array<i64: 8, 72>}, {transform_indices = @transform_1, window_bounds = array<i64: 72, 32>}, {pipeline_mode = #tpu.pipeline_mode<synchronous>, transform_indices = @transform_2, window_bounds = array<i64: 8, 1>}, {transform_indices = @transform_3, window_bounds = array<i64: 8, 32>}]} {
    %c0 = arith.constant 0 : index
    %c0_0 = arith.constant 0 : index
    %0 = vector.load %arg1[%c0, %c0_0] : memref<8x72xf32, #tpu.memory_space<vmem>>, vector<8x72xf32>
    %c0_1 = arith.constant 0 : index
    %c0_2 = arith.constant 0 : index
    %1 = vector.load %arg2[%c0_1, %c0_2] : memref<72x32xf32, #tpu.memory_space<vmem>>, vector<72x32xf32>
    %cst = arith.constant dense<0.000000e+00> : vector<8x32xf32>
    %2 = tpu.matmul %0, %1, %cst {dimension_numbers = #tpu.dot_dimension_numbers<[1], [0], [0], [1], [0, 0, 1, 1], [], []>} : vector<8x72xf32>, vector<72x32xf32>, vector<8x32xf32> -> vector<8x32xf32>
    %c0_3 = arith.constant 0 : index
    %c0_4 = arith.constant 0 : index
    %3 = vector.load %arg3[%c0_3, %c0_4] : memref<8x1xf32, #tpu.memory_space<vmem>>, vector<8x1xf32>
    %4 = vector.broadcast %3 : vector<8x1xf32> to vector<8x32xf32>
    %5 = arith.addf %2, %4 : vector<8x32xf32>
    %c0_5 = arith.constant 0 : index
    %c0_6 = arith.constant 0 : index
    %6 = vector.load %arg4[%c0_5, %c0_6] : memref<8x32xf32, #tpu.memory_space<vmem>>, vector<8x32xf32>
    tpu.vector_store %arg4[%c0_5, %c0_6], %5 {strides = array<i32>} : memref<8x32xf32, #tpu.memory_space<vmem>>, vector<8x32xf32>,
    return
  }
  func.func @transform_0(%arg0: i32) -> (i32, i32) {
    %c0_i32 = arith.constant 0 : i32
    %c0_i32_0 = arith.constant 0 : i32
    %c0_i32_1 = arith.constant 0 : i32
    return %c0_i32, %c0_i32_0 : i32, i32
  }
  func.func @transform_1(%arg0: i32) -> (i32, i32) {
    %c0_i32 = arith.constant 0 : i32
    %c0_i32_0 = arith.constant 0 : i32
    return %c0_i32, %arg0 : i32, i32
  }
  func.func @transform_2(%arg0: i32) -> (i32, i32) {
    %c0_i32 = arith.constant 0 : i32
    %c0_i32_0 = arith.constant 0 : i32
    %c0_i32_1 = arith.constant 0 : i32
    return %c0_i32, %c0_i32_0 : i32, i32
  }
  func.func @transform_3(%arg0: i32) -> (i32, i32) {
    %c0_i32 = arith.constant 0 : i32
    %c0_i32_0 = arith.constant 0 : i32
    return %c0_i32, %arg0 : i32, i32
  }
}

module attributes {stable_mosaic.version = 11 : i64} {
  func.func @_mm_kernel(%arg0: i32, %arg1: memref<72x8xf32, #tpu.memory_space<vmem>>, %arg2: memref<8x32xf32, #tpu.memory_space<vmem>>, %arg3: memref<72x32xf32, #tpu.memory_space<vmem>>) attributes {dimension_semantics = [#tpu.dimension_semantics<parallel>], iteration_bounds = array<i64: 1>, scalar_prefetch = 0 : i64, scratch_operands = 0 : i64, tpu.core_type = #tpu.core_type<tc>, window_params = [{pipeline_mode = #tpu.pipeline_mode<synchronous>, transform_indices = @transform_0, window_bounds = array<i64: 72, 8>}, {transform_indices = @transform_1, window_bounds = array<i64: 8, 32>}, {transform_indices = @transform_2, window_bounds = array<i64: 72, 32>}]} {
    %c0 = arith.constant 0 : index
    %c0_0 = arith.constant 0 : index
    %0 = vector.load %arg1[%c0, %c0_0] : memref<72x8xf32, #tpu.memory_space<vmem>>, vector<72x8xf32>
    %c0_1 = arith.constant 0 : index
    %c0_2 = arith.constant 0 : index
    %1 = vector.load %arg2[%c0_1, %c0_2] : memref<8x32xf32, #tpu.memory_space<vmem>>, vector<8x32xf32>
    %cst = arith.constant dense<0.000000e+00> : vector<72x32xf32>
    %2 = tpu.matmul %0, %1, %cst {dimension_numbers = #tpu.dot_dimension_numbers<[1], [0], [0], [1], [0, 0, 1, 1], [], []>} : vector<72x8xf32>, vector<8x32xf32>, vector<72x32xf32> -> vector<72x32xf32>
    %c0_3 = arith.constant 0 : index
    %c0_4 = arith.constant 0 : index
    %3 = vector.load %arg3[%c0_3, %c0_4] : memref<72x32xf32, #tpu.memory_space<vmem>>, vector<72x32xf32>
    tpu.vector_store %arg3[%c0_3, %c0_4], %2 {strides = array<i32>} : memref<72x32xf32, #tpu.memory_space<vmem>>, vector<72x32xf32>,
    return
  }
  func.func @transform_0(%arg0: i32) -> (i32, i32) {
    %c0_i32 = arith.constant 0 : i32
    %c0_i32_0 = arith.constant 0 : i32
    %c0_i32_1 = arith.constant 0 : i32
    return %c0_i32, %c0_i32_0 : i32, i32
  }
  func.func @transform_1(%arg0: i32) -> (i32, i32) {
    %c0_i32 = arith.constant 0 : i32
    %c0_i32_0 = arith.constant 0 : i32
    return %c0_i32, %arg0 : i32, i32
  }
  func.func @transform_2(%arg0: i32) -> (i32, i32) {
    %c0_i32 = arith.constant 0 : i32
    %c0_i32_0 = arith.constant 0 : i32
    return %c0_i32, %arg0 : i32, i32
  }
}

</mosaic_0001>

<llo_original>
// kernel: resnet_fpn3_forward.16
$region0: #{resnet_fpn3_forward.16}
  #allocation0 [shape = 'u32[]', space=smem, size = 0x4, offset = 0x4, fixed_abs, tag = 'smem constant byte address 0x4 - core index']
  #allocation1 [shape = 'u32[144,128]{1,0:T(1,128)}', space=vmem, size = 0x12000, scoped, tag = 'internal scratch']
  %s0 = inlined_call_operand.vmem [shape: f32[4,36], index: 0, kind: input, shape index: {}]
  %s1 = inlined_call_operand.vmem [shape: f32[36,512], index: 1, kind: input, shape index: {}]
  %s2 = inlined_call_operand.vmem [shape: f32[4,1], index: 2, kind: input, shape index: {}]
  %s3 = inlined_call_operand.vmem [shape: f32[4,512], index: 3, kind: output, shape index: {}]
  %s4 = sld [smem:[#allocation0]]
  $region68: #{resnet_fpn3_forward.16} parent=0
    _
  %s6 = ssub.s32 1, %s4
  %s7 = scalar_select 0, %s6, %s4
  $region1: #{resnet_fpn3_forward.16} parent=0
    #allocation2 [shape = 'u8[81920]{0}', space=vmem, size = 0x14000, scoped, tag = 'input window, operand 1']
    loop: start=0, step=1, limit=4
    $region2: #{resnet_fpn3_forward.16} parent=1 // loop_pre_header
      _
    $region3: #{resnet_fpn3_forward.16} parent=1 // loop_header
      %s9 = sphi 0, %s13
      %p10 = scmp.ge.s32.totalorder %s9, 4
      %s17 = sphi 0, %s17
      %s19 = sphi 0, %s17
      %s20 = sphi 0, %s19
      %s34 = sphi 0, %s20
      %s40 = sphi 0, %s42
      %s43 = sphi 0, %s40
      %s44 = sphi 0, %s43
      %s60 = sphi 0, %s44
      %s64 = sphi 0, %s64
      %s66 = sphi 0, %s64
      %s67 = sphi 0, %s66
      %s81 = sphi 0, %s67
      %s87 = sphi 0, %s89
      %s90 = sphi 0, %s87
      %s91 = sphi 0, %s90
      %s107 = sphi 0, %s91
    $region4: #{resnet_fpn3_forward.16} parent=1 // loop_header_branch
      %12 = sbr.rel (%p10) target = $region8
    $region5: #{resnet_fpn3_forward.16} parent=1 // loop_body
      %s14 = ssub.s32 %s9, 1
      %s15 = ssub.s32 %s9, 2
      %s16 = sadd.s32 %s9, 1
      %s18 = sadd.s32 %s17, 1
      %p21 = scmp.eq.s32.totalorder %s9, 1
      %p22 = scmp.ne.s32.totalorder %s17, %s19
      %p23 = scmp.eq.s32.totalorder %s9, 0
      %p24 = por %p22, %p23
      %p25 = scmp.ne.s32.totalorder %s17, %s19
      %p26 = scmp.eq.s32.totalorder %s14, 1
      %p27 = por %p25, %p26
      %p28 = scmp.ne.s32.totalorder %s19, %s20
      %p29 = scmp.eq.s32.totalorder %s14, 0
      %p30 = por %p28, %p29
      %p31 = scmp.ne.s32.totalorder %s19, %s20
      %p32 = scmp.eq.s32.totalorder %s15, 1
      %p33 = por %p31, %p32
      %p35 = scmp.ne.s32.totalorder %s20, %s34
      %p36 = scmp.eq.s32.totalorder %s15, 0
      %p37 = por %p35, %p36
      %s38 = ssub.s32 %s9, %s16
      %p39 = scmp.eq.s32.totalorder %s38, 0
      %s41 = sadd.s32 %s40, 1
      %s42 = scalar_select %p39, %s40, %s41
      %p45 = pneg %p39
      %p46 = scmp.eq.s32.totalorder %s9, 1
      %p47 = por %p45, %p46
      %p48 = scmp.ne.s32.totalorder %s40, %s43
      %p49 = scmp.eq.s32.totalorder %s9, 0
      %p50 = por %p48, %p49
      %p51 = scmp.ne.s32.totalorder %s40, %s43
      %p52 = scmp.eq.s32.totalorder %s14, 1
      %p53 = por %p51, %p52
      %p54 = scmp.ne.s32.totalorder %s43, %s44
      %p55 = scmp.eq.s32.totalorder %s14, 0
      %p56 = por %p54, %p55
      %p57 = scmp.ne.s32.totalorder %s43, %s44
      %p58 = scmp.eq.s32.totalorder %s15, 1
      %p59 = por %p57, %p58
      %p61 = scmp.ne.s32.totalorder %s44, %s60
      %p62 = scmp.eq.s32.totalorder %s15, 0
      %p63 = por %p61, %p62
      %s65 = sadd.s32 %s64, 1
      %p68 = scmp.eq.s32.totalorder %s9, 1
      %p69 = scmp.ne.s32.totalorder %s64, %s66
      %p70 = scmp.eq.s32.totalorder %s9, 0
      %p71 = por %p69, %p70
      %p72 = scmp.ne.s32.totalorder %s64, %s66
      %p73 = scmp.eq.s32.totalorder %s14, 1
      %p74 = por %p72, %p73
      %p75 = scmp.ne.s32.totalorder %s66, %s67
      %p76 = scmp.eq.s32.totalorder %s14, 0
      %p77 = por %p75, %p76
      %p78 = scmp.ne.s32.totalorder %s66, %s67
      %p79 = scmp.eq.s32.totalorder %s15, 1
      %p80 = por %p78, %p79
      %p82 = scmp.ne.s32.totalorder %s67, %s81
      %p83 = scmp.eq.s32.totalorder %s15, 0
      %p84 = por %p82, %p83
      %s85 = ssub.s32 %s9, %s16
      %p86 = scmp.eq.s32.totalorder %s85, 0
      %s88 = sadd.s32 %s87, 1
      %s89 = scalar_select %p86, %s87, %s88
      %p92 = pneg %p86
      %p93 = scmp.eq.s32.totalorder %s9, 1
      %p94 = por %p92, %p93
      %p95 = scmp.ne.s32.totalorder %s87, %s90
      %p96 = scmp.eq.s32.totalorder %s9, 0
      %p97 = por %p95, %p96
      %p98 = scmp.ne.s32.totalorder %s87, %s90
      %p99 = scmp.eq.s32.totalorder %s14, 1
      %p100 = por %p98, %p99
      %p101 = scmp.ne.s32.totalorder %s90, %s91
      %p102 = scmp.eq.s32.totalorder %s14, 0
      %p103 = por %p101, %p102
      %p104 = scmp.ne.s32.totalorder %s90, %s91
      %p105 = scmp.eq.s32.totalorder %s15, 1
      %p106 = por %p104, %p105
      %p108 = scmp.ne.s32.totalorder %s91, %s107
      %p109 = scmp.eq.s32.totalorder %s15, 0
      %p110 = por %p108, %p109
      %p111 = scmp.le.s32.totalorder 1, %s9
      %p112 = scmp.lt.s32.totalorder %s9, 3
      %p113 = pnand %p111, %p112
      %p114 = pneg %p113
      // Predicated region
      $region9: #{resnet_fpn3_forward.16} parent=5 // pred_check
        _
      $region10: #{resnet_fpn3_forward.16} parent=5 // pred_check_branch
        %116 = sbr.rel (%p113) target = $region12
      $region11: #{resnet_fpn3_forward.16} parent=5 // pred_region
        %s117 = ssub.s32 %s9, 1
        // Predicated region
        $region13: #{resnet_fpn3_forward.16} parent=11 // pred_check
          %p118 = pneg %p30
        $region14: #{resnet_fpn3_forward.16} parent=11 // pred_check_branch
          %120 = sbr.rel (%p118) target = $region16
        $region15: #{resnet_fpn3_forward.16} parent=11 // pred_region
          _
        $region16: #{resnet_fpn3_forward.16} parent=11 // pred_fallthru
          _
        // Predicated region
        $region17: #{resnet_fpn3_forward.16} parent=11 // pred_check
          %p121 = pneg %p77
        $region18: #{resnet_fpn3_forward.16} parent=11 // pred_check_branch
          %123 = sbr.rel (%p121) target = $region20
        $region19: #{resnet_fpn3_forward.16} parent=11 // pred_region
          _
        $region20: #{resnet_fpn3_forward.16} parent=11 // pred_fallthru
          _
      $region12: #{resnet_fpn3_forward.16} parent=5 // pred_fallthru
        _
      %p124 = scmp.lt.s32.totalorder %s9, 2
      // Predicated region
      $region21: #{resnet_fpn3_forward.16} parent=5 // pred_check
        %p125 = pneg %p124
      $region22: #{resnet_fpn3_forward.16} parent=5 // pred_check_branch
        %127 = sbr.rel (%p125) target = $region24
      $region23: #{resnet_fpn3_forward.16} parent=5 // pred_region
        // Predicated region
        $region25: #{resnet_fpn3_forward.16} parent=23 // pred_check
          %p128 = pneg %p50
        $region26: #{resnet_fpn3_forward.16} parent=23 // pred_check_branch
          %130 = sbr.rel (%p128) target = $region28
        $region27: #{resnet_fpn3_forward.16} parent=23 // pred_region
          %s131 = sand.u32 %s40, 1
          %s132 = sand.u32 %s40, 1
          %s133 = smul.addr %s132, 80
          %s134 = scalar_lea.vmem [#allocation2], %s133
          %s135 = smul.u32 2, %s9
          %s136 = smul.addr %s135, 8
          %s137 = scalar_lea.vmem %s1, %s136
          // Predicated region
          $region29: #{resnet_fpn3_forward.16} parent=27 // pred_check
            _
          $region30: #{resnet_fpn3_forward.16} parent=27 // pred_check_branch
            %139 = sbr.rel (0) target = $region32
          $region31: #{resnet_fpn3_forward.16} parent=27 // pred_region
            // Predicated region
            $region33: #{resnet_fpn3_forward.16} parent=31 // pred_check
              _
            $region34: #{resnet_fpn3_forward.16} parent=31 // pred_check_branch
              %141 = sbr.rel (0) target = $region36
            $region35: #{resnet_fpn3_forward.16} parent=31 // pred_region
              loop: start=0, step=1, limit=1
              $region37: #{resnet_fpn3_forward.16} parent=35 // loop_pre_header
                _
              $region38: #{resnet_fpn3_forward.16} parent=35 // loop_header
                %s143 = sphi 0, %s147
                %p144 = scmp.ge.s32.totalorder %s143, 1
                %s148 = sphi %s137, %s137
                %s149 = sphi %s134, %s134
              $region39: #{resnet_fpn3_forward.16} parent=35 // loop_header_branch
                %146 = sbr.rel (%p144) target = $region43
              $region40: #{resnet_fpn3_forward.16} parent=35 // loop_body
                %v150 = vld [vmem:[%s148] sm:$0xff]
                %151 = vst [vmem:[%s149] sm:$0xff] %v150
                %v152 = vld [vmem:[%s148 + $0x8] sm:$0xff]
                %153 = vst [vmem:[%s149 + $0x8] sm:$0xff] %v152
                %v154 = vld [vmem:[%s148 + $0x20] sm:$0xff]
                %155 = vst [vmem:[%s149 + $0x10] sm:$0xff] %v154
                %v156 = vld [vmem:[%s148 + $0x28] sm:$0xff]
                %157 = vst [vmem:[%s149 + $0x18] sm:$0xff] %v156
                %v158 = vld [vmem:[%s148 + $0x40] sm:$0xff]
                %159 = vst [vmem:[%s149 + $0x20] sm:$0xff] %v158
                %v160 = vld [vmem:[%s148 + $0x48] sm:$0xff]
                %161 = vst [vmem:[%s149 + $0x28] sm:$0xff] %v160
                %v162 = vld [vmem:[%s148 + $0x60] sm:$0xff]
                %163 = vst [vmem:[%s149 + $0x30] sm:$0xff] %v162
                %v164 = vld [vmem:[%s148 + $0x68] sm:$0xff]
                %165 = vst [vmem:[%s149 + $0x38] sm:$0xff] %v164
                %v166 = vld [vmem:[%s148 + $0x80] sm:$0xff]
                %167 = vst [vmem:[%s149 + $0x40] sm:$0xff] %v166
                %v168 = vld [vmem:[%s148 + $0x88] sm:$0xff]
                %169 = vst [vmem:[%s149 + $0x48] sm:$0xff] %v168
              $region41: #{resnet_fpn3_forward.16} parent=35 // loop_footer
                %s147 = sadd.s32 1, %s143
              $region42: #{resnet_fpn3_forward.16} parent=35 // loop_footer_branch
                %142 = sbr.rel target = $region38
              $region43: #{resnet_fpn3_forward.16} parent=35 // loop_exit
                _
            $region36: #{resnet_fpn3_forward.16} parent=31 // pred_fallthru
              _
            // Predicated region
            $region44: #{resnet_fpn3_forward.16} parent=31 // pred_check
              _
            $region45: #{resnet_fpn3_forward.16} parent=31 // pred_check_branch
              %171 = sbr.rel target = $region47
            $region46: #{resnet_fpn3_forward.16} parent=31 // pred_region
              _
            $region47: #{resnet_fpn3_forward.16} parent=31 // pred_fallthru
              _
          $region32: #{resnet_fpn3_forward.16} parent=27 // pred_fallthru
            _
          %172 = vnop
        $region28: #{resnet_fpn3_forward.16} parent=23 // pred_fallthru
          _
      $region24: #{resnet_fpn3_forward.16} parent=5 // pred_fallthru
        _
      %p173 = scmp.le.s32.totalorder 1, %s9
      %p174 = scmp.lt.s32.totalorder %s9, 3
      %p175 = pnand %p173, %p174
      %p176 = pneg %p175
      // Predicated region
      $region48: #{resnet_fpn3_forward.16} parent=5 // pred_check
        _
      $region49: #{resnet_fpn3_forward.16} parent=5 // pred_check_branch
        %178 = sbr.rel (%p175) target = $region51
      $region50: #{resnet_fpn3_forward.16} parent=5 // pred_region
        %s179 = ssub.s32 %s9, 1
        %s180 = sand.u32 %s43, 1
        %s181 = sand.u32 %s43, 1
        %s182 = smul.addr %s181, 80
        %s183 = scalar_lea.vmem [#allocation2], %s182
        // Predicated region
        $region52: #{resnet_fpn3_forward.16} parent=50 // pred_check
          %p184 = pneg %p56
        $region53: #{resnet_fpn3_forward.16} parent=50 // pred_check_branch
          %186 = sbr.rel (%p184) target = $region55
        $region54: #{resnet_fpn3_forward.16} parent=50 // pred_region
          _
        $region55: #{resnet_fpn3_forward.16} parent=50 // pred_fallthru
          _
        %p187 = pneg %p30
        %p188 = pneg %p27
        %s189 = sand.u32 %s43, 1
        %s190 = sand.u32 %s43, 1
        %s191 = smul.addr %s190, 80
        %s192 = scalar_lea.vmem [#allocation2], %s191
        %p193 = pneg %p56
        %p194 = pneg %p53
        %p195 = pneg %p77
        %p196 = pneg %p74
        %p197 = pneg %p103
        %p198 = pneg %p100
        %s199 = smul.u32 2, %s14
        %p200 = scmp.lt.s32.totalorder %s199, 3
        %s201 = scalar_select %p200, %s199, 3
        %s202 = smul.addr %s201, 4
        %s203 = scalar_lea.vmem %s3, %s202
        %s204 = smul.u32 2, %s14
        %s205 = smul.u32 2, %s14
        %p206 = scmp.lt.s32.totalorder %s205, 3
        %s207 = scalar_select %p206, %s205, 3
        %s208 = smul.addr %s207, 4
        %s209 = scalar_lea.vmem %s3, %s208
        %s210 = smul.u32 2, %s14
        %v211 = vld [vmem:[%s0] sm:$0xf]
        %v212 = vld [vmem:[%s183] sm:$0xff]
        %v213 = vld [vmem:[%s183 + $0x8] sm:$0xff]
        %v214 = vld [vmem:[%s183 + $0x10] sm:$0xff]
        %v215 = vld [vmem:[%s183 + $0x18] sm:$0xff]
        %v216 = vld [vmem:[%s183 + $0x20] sm:$0xff]
        %v217 = vld [vmem:[%s183 + $0x28] sm:$0xff]
        %v218 = vld [vmem:[%s183 + $0x30] sm:$0xff]
        %v219 = vld [vmem:[%s183 + $0x38] sm:$0xff]
        %v220 = vld [vmem:[%s183 + $0x40] sm:$0xf]
        %v221 = vld [vmem:[%s183 + $0x48] sm:$0xf]
        %v222 = vld [vmem:[%s2] sm:$0xf]
        %224 = vset.pattern.permute.xlu0 0
        %225 = vperm.xlu0 %224, %v222
        %v226 = vpop.permute.xlu0 %225
        %vm228 = vcmask 293888
        %v230 = vsel %vm228, %v211, 0
        %vm232 = vcmask 1043456
        %v234 = vsel %vm232, %v220, 0
        %v237 = vsel %vm232, %v221, 0
        %239 = vmatprep.subr.mxu0 %v213
        %240 = vmatpush1.msra.mxu0 %v212
        %241 = vmatprep.subr.mxu0 %v215
        %242 = vmatpush1.msra.mxu0 %v214
        %243 = vmatprep.subr.mxu0 %v217
        %244 = vmatpush1.msra.mxu0 %v216
        %245 = vmatprep.subr.mxu0 %v219
        %246 = vmatpush1.msra.mxu0 %v218
        %247 = vmatprep.subr.mxu0 %v237
        %248 = vmatpush1.msra.mxu0 %v234
        %249 = vmatprep.subr.mxu0 0.0
        %250 = vmatpush1.msra.mxu0 0.0
        %251 = vmatprep.subr.mxu0 0.0
        %252 = vmatpush1.msra.mxu0 0.0
        %253 = vmatprep.subr.mxu0 0.0
        %254 = vmatpush1.msra.mxu0 0.0
        %255 = vmatprep.subr.mxu0 0.0
        %256 = vmatpush1.msra.mxu0 0.0
        %257 = vmatprep.subr.mxu0 0.0
        %258 = vmatpush1.msra.mxu0 0.0
        %259 = vmatprep.subr.mxu0 0.0
        %260 = vmatpush1.msra.mxu0 0.0
        %261 = vmatprep.subr.mxu0 0.0
        %262 = vmatpush1.msra.mxu0 0.0
        %263 = vmatprep.subr.mxu0 0.0
        %264 = vmatpush1.msra.mxu0 0.0
        %265 = vmatprep.subr.mxu0 0.0
        %266 = vmatpush1.msra.mxu0 0.0
        %267 = vmatprep.subr.mxu0 0.0
        %268 = vmatpush1.msra.mxu0 0.0
        %269 = vmatprep.subr.mxu0 0.0
        %270 = vmatpush1.msra.mxu0 0.0
        %271 = vmatprep.subr.mxu0 0.0
        %272 = vmatpush1.msra.mxu0 0.0
        %273 = vmatprep.subr.mxu0 0.0
        %274 = vmatpush1.msra.mxu0 0.0
        %275 = vmatprep.subr.mxu0 0.0
        %276 = vmatpush1.msra.mxu0 0.0
        %277 = vmatprep.subr.mxu0 0.0
        %278 = vmatpush1.msra.mxu0 0.0
        %279 = vmatprep.subr.mxu0 0.0
        %280 = vmatpush1.msra.mxu0 0.0
        %281 = vmatprep.subr.mxu0 0.0
        %282 = vmatpush1.msra.mxu0 0.0
        %283 = vmatprep.subr.mxu0 0.0
        %284 = vmatpush1.msra.mxu0 0.0
        %285 = vmatprep.subr.mxu0 0.0
        %286 = vmatpush1.msra.mxu0 0.0
        %287 = vmatprep.subr.mxu0 0.0
        %288 = vmatpush1.msra.mxu0 0.0
        %289 = vmatprep.subr.mxu0 0.0
        %290 = vmatpush1.msra.mxu0 0.0
        %291 = vmatprep.subr.mxu0 0.0
        %292 = vmatpush1.msra.mxu0 0.0
        %293 = vmatprep.subr.mxu0 0.0
        %294 = vmatpush1.msra.mxu0 0.0
        %295 = vmatprep.subr.mxu0 0.0
        %296 = vmatpush1.msra.mxu0 0.0
        %297 = vmatprep.subr.mxu0 0.0
        %298 = vmatpush1.msra.mxu0 0.0
        %299 = vmatprep.subr.mxu0 0.0
        %300 = vmatpush1.msra.mxu0 0.0
        %301 = vmatprep.subr.mxu0 0.0
        %302 = vmatpush1.msra.mxu0 0.0
        %303 = vmatprep.mubr.f32.mxu0 0.0
        %304 = vmatmul.mubr.f32.gmra.mrb[0].mxu0 %v230
        %v305 = vpop.f32.mrb[0].mxu0
        %v306 = vadd.f32 %v226, %v305
        %v307 = vpop.f32.mrb[0].mxu0
        %v308 = vadd.f32 %v226, %v307
        %309 = vdwg.mxu0
        %v312 = vcombine.low %v306, %v308
        %314 = vst [vmem:[%s209] sm:$0xff] %v312
        %s315 = smul.u32 2, %s14
        %p316 = scmp.lt.s32.totalorder %s315, 3
        %s317 = scalar_select %p316, %s315, 3
        %s318 = smul.addr %s317, 4
        %s319 = scalar_lea.vmem %s3, %s318
        // Predicated region
        $region56: #{resnet_fpn3_forward.16} parent=50 // pred_check
          %p320 = pneg %p100
        $region57: #{resnet_fpn3_forward.16} parent=50 // pred_check_branch
          %322 = sbr.rel (%p320) target = $region59
        $region58: #{resnet_fpn3_forward.16} parent=50 // pred_region
          %s323 = smul.u32 2, %s14
        $region59: #{resnet_fpn3_forward.16} parent=50 // pred_fallthru
          _
      $region51: #{resnet_fpn3_forward.16} parent=5 // pred_fallthru
        _
      %p324 = scmp.le.s32.totalorder 2, %s9
      // Predicated region
      $region60: #{resnet_fpn3_forward.16} parent=5 // pred_check
        %p325 = pneg %p324
      $region61: #{resnet_fpn3_forward.16} parent=5 // pred_check_branch
        %327 = sbr.rel (%p325) target = $region63
      $region62: #{resnet_fpn3_forward.16} parent=5 // pred_region
        %s328 = ssub.s32 %s9, 2
        // Predicated region
        $region64: #{resnet_fpn3_forward.16} parent=62 // pred_check
          %p329 = pneg %p106
        $region65: #{resnet_fpn3_forward.16} parent=62 // pred_check_branch
          %331 = sbr.rel (%p329) target = $region67
        $region66: #{resnet_fpn3_forward.16} parent=62 // pred_region
          %s332 = smul.u32 2, %s15
          %p333 = scmp.lt.s32.totalorder %s332, 3
          %s334 = scalar_select %p333, %s332, 3
          %s335 = smul.addr %s334, 4
          %s336 = scalar_lea.vmem %s3, %s335
        $region67: #{resnet_fpn3_forward.16} parent=62 // pred_fallthru
          _
      $region63: #{resnet_fpn3_forward.16} parent=5 // pred_fallthru
        _
    $region6: #{resnet_fpn3_forward.16} parent=1 // loop_footer
      %s13 = sadd.s32 1, %s9
    $region7: #{resnet_fpn3_forward.16} parent=1 // loop_footer_branch
      %8 = sbr.rel target = $region3
    $region8: #{resnet_fpn3_forward.16} parent=1 // loop_exit
      _

// kernel: resnet_fpn3_forward.18
$region0: #{resnet_fpn3_forward.18}
  #allocation0 [shape = 'u32[]', space=smem, size = 0x4, offset = 0x4, fixed_abs, tag = 'smem constant byte address 0x4 - core index']
  #allocation1 [shape = 'u32[144,128]{1,0:T(1,128)}', space=vmem, size = 0x12000, scoped, tag = 'internal scratch']
  %s0 = inlined_call_operand.vmem [shape: f32[4,36], index: 0, kind: input, shape index: {}]
  %s1 = inlined_call_operand.vmem [shape: f32[36,512], index: 1, kind: input, shape index: {}]
  %s2 = inlined_call_operand.vmem [shape: f32[4,1], index: 2, kind: input, shape index: {}]
  %s3 = inlined_call_operand.vmem [shape: f32[4,512], index: 3, kind: input, shape index: {}]
  %s4 = inlined_call_operand.vmem [shape: f32[4,512], index: 4, kind: output, shape index: {}]
  %s5 = sld [smem:[#allocation0]]
  $region72: #{resnet_fpn3_forward.18} parent=0
    _
  %s7 = ssub.s32 1, %s5
  %s8 = scalar_select 0, %s7, %s5
  $region1: #{resnet_fpn3_forward.18} parent=0
    #allocation2 [shape = 'u8[81920]{0}', space=vmem, size = 0x14000, scoped, tag = 'input window, operand 1']
    loop: start=0, step=1, limit=4
    $region2: #{resnet_fpn3_forward.18} parent=1 // loop_pre_header
      _
    $region3: #{resnet_fpn3_forward.18} parent=1 // loop_header
      %s10 = sphi 0, %s14
      %p11 = scmp.ge.s32.totalorder %s10, 4
      %s18 = sphi 0, %s18
      %s20 = sphi 0, %s18
      %s21 = sphi 0, %s20
      %s35 = sphi 0, %s21
      %s41 = sphi 0, %s43
      %s44 = sphi 0, %s41
      %s45 = sphi 0, %s44
      %s61 = sphi 0, %s45
      %s65 = sphi 0, %s65
      %s67 = sphi 0, %s65
      %s68 = sphi 0, %s67
      %s82 = sphi 0, %s68
      %s88 = sphi 0, %s90
      %s91 = sphi 0, %s88
      %s92 = sphi 0, %s91
      %s108 = sphi 0, %s92
      %s114 = sphi 0, %s116
      %s117 = sphi 0, %s114
      %s118 = sphi 0, %s117
      %s134 = sphi 0, %s118
    $region4: #{resnet_fpn3_forward.18} parent=1 // loop_header_branch
      %13 = sbr.rel (%p11) target = $region8
    $region5: #{resnet_fpn3_forward.18} parent=1 // loop_body
      %s15 = ssub.s32 %s10, 1
      %s16 = ssub.s32 %s10, 2
      %s17 = sadd.s32 %s10, 1
      %s19 = sadd.s32 %s18, 1
      %p22 = scmp.eq.s32.totalorder %s10, 1
      %p23 = scmp.ne.s32.totalorder %s18, %s20
      %p24 = scmp.eq.s32.totalorder %s10, 0
      %p25 = por %p23, %p24
      %p26 = scmp.ne.s32.totalorder %s18, %s20
      %p27 = scmp.eq.s32.totalorder %s15, 1
      %p28 = por %p26, %p27
      %p29 = scmp.ne.s32.totalorder %s20, %s21
      %p30 = scmp.eq.s32.totalorder %s15, 0
      %p31 = por %p29, %p30
      %p32 = scmp.ne.s32.totalorder %s20, %s21
      %p33 = scmp.eq.s32.totalorder %s16, 1
      %p34 = por %p32, %p33
      %p36 = scmp.ne.s32.totalorder %s21, %s35
      %p37 = scmp.eq.s32.totalorder %s16, 0
      %p38 = por %p36, %p37
      %s39 = ssub.s32 %s10, %s17
      %p40 = scmp.eq.s32.totalorder %s39, 0
      %s42 = sadd.s32 %s41, 1
      %s43 = scalar_select %p40, %s41, %s42
      %p46 = pneg %p40
      %p47 = scmp.eq.s32.totalorder %s10, 1
      %p48 = por %p46, %p47
      %p49 = scmp.ne.s32.totalorder %s41, %s44
      %p50 = scmp.eq.s32.totalorder %s10, 0
      %p51 = por %p49, %p50
      %p52 = scmp.ne.s32.totalorder %s41, %s44
      %p53 = scmp.eq.s32.totalorder %s15, 1
      %p54 = por %p52, %p53
      %p55 = scmp.ne.s32.totalorder %s44, %s45
      %p56 = scmp.eq.s32.totalorder %s15, 0
      %p57 = por %p55, %p56
      %p58 = scmp.ne.s32.totalorder %s44, %s45
      %p59 = scmp.eq.s32.totalorder %s16, 1
      %p60 = por %p58, %p59
      %p62 = scmp.ne.s32.totalorder %s45, %s61
      %p63 = scmp.eq.s32.totalorder %s16, 0
      %p64 = por %p62, %p63
      %s66 = sadd.s32 %s65, 1
      %p69 = scmp.eq.s32.totalorder %s10, 1
      %p70 = scmp.ne.s32.totalorder %s65, %s67
      %p71 = scmp.eq.s32.totalorder %s10, 0
      %p72 = por %p70, %p71
      %p73 = scmp.ne.s32.totalorder %s65, %s67
      %p74 = scmp.eq.s32.totalorder %s15, 1
      %p75 = por %p73, %p74
      %p76 = scmp.ne.s32.totalorder %s67, %s68
      %p77 = scmp.eq.s32.totalorder %s15, 0
      %p78 = por %p76, %p77
      %p79 = scmp.ne.s32.totalorder %s67, %s68
      %p80 = scmp.eq.s32.totalorder %s16, 1
      %p81 = por %p79, %p80
      %p83 = scmp.ne.s32.totalorder %s68, %s82
      %p84 = scmp.eq.s32.totalorder %s16, 0
      %p85 = por %p83, %p84
      %s86 = ssub.s32 %s10, %s17
      %p87 = scmp.eq.s32.totalorder %s86, 0
      %s89 = sadd.s32 %s88, 1
      %s90 = scalar_select %p87, %s88, %s89
      %p93 = pneg %p87
      %p94 = scmp.eq.s32.totalorder %s10, 1
      %p95 = por %p93, %p94
      %p96 = scmp.ne.s32.totalorder %s88, %s91
      %p97 = scmp.eq.s32.totalorder %s10, 0
      %p98 = por %p96, %p97
      %p99 = scmp.ne.s32.totalorder %s88, %s91
      %p100 = scmp.eq.s32.totalorder %s15, 1
      %p101 = por %p99, %p100
      %p102 = scmp.ne.s32.totalorder %s91, %s92
      %p103 = scmp.eq.s32.totalorder %s15, 0
      %p104 = por %p102, %p103
      %p105 = scmp.ne.s32.totalorder %s91, %s92
      %p106 = scmp.eq.s32.totalorder %s16, 1
      %p107 = por %p105, %p106
      %p109 = scmp.ne.s32.totalorder %s92, %s108
      %p110 = scmp.eq.s32.totalorder %s16, 0
      %p111 = por %p109, %p110
      %s112 = ssub.s32 %s10, %s17
      %p113 = scmp.eq.s32.totalorder %s112, 0
      %s115 = sadd.s32 %s114, 1
      %s116 = scalar_select %p113, %s114, %s115
      %p119 = pneg %p113
      %p120 = scmp.eq.s32.totalorder %s10, 1
      %p121 = por %p119, %p120
      %p122 = scmp.ne.s32.totalorder %s114, %s117
      %p123 = scmp.eq.s32.totalorder %s10, 0
      %p124 = por %p122, %p123
      %p125 = scmp.ne.s32.totalorder %s114, %s117
      %p126 = scmp.eq.s32.totalorder %s15, 1
      %p127 = por %p125, %p126
      %p128 = scmp.ne.s32.totalorder %s117, %s118
      %p129 = scmp.eq.s32.totalorder %s15, 0
      %p130 = por %p128, %p129
      %p131 = scmp.ne.s32.totalorder %s117, %s118
      %p132 = scmp.eq.s32.totalorder %s16, 1
      %p133 = por %p131, %p132
      %p135 = scmp.ne.s32.totalorder %s118, %s134
      %p136 = scmp.eq.s32.totalorder %s16, 0
      %p137 = por %p135, %p136
      %p138 = scmp.le.s32.totalorder 1, %s10
      %p139 = scmp.lt.s32.totalorder %s10, 3
      %p140 = pnand %p138, %p139
      %p141 = pneg %p140
      // Predicated region
      $region9: #{resnet_fpn3_forward.18} parent=5 // pred_check
        _
      $region10: #{resnet_fpn3_forward.18} parent=5 // pred_check_branch
        %143 = sbr.rel (%p140) target = $region12
      $region11: #{resnet_fpn3_forward.18} parent=5 // pred_region
        %s144 = ssub.s32 %s10, 1
        // Predicated region
        $region13: #{resnet_fpn3_forward.18} parent=11 // pred_check
          %p145 = pneg %p31
        $region14: #{resnet_fpn3_forward.18} parent=11 // pred_check_branch
          %147 = sbr.rel (%p145) target = $region16
        $region15: #{resnet_fpn3_forward.18} parent=11 // pred_region
          _
        $region16: #{resnet_fpn3_forward.18} parent=11 // pred_fallthru
          _
        // Predicated region
        $region17: #{resnet_fpn3_forward.18} parent=11 // pred_check
          %p148 = pneg %p78
        $region18: #{resnet_fpn3_forward.18} parent=11 // pred_check_branch
          %150 = sbr.rel (%p148) target = $region20
        $region19: #{resnet_fpn3_forward.18} parent=11 // pred_region
          _
        $region20: #{resnet_fpn3_forward.18} parent=11 // pred_fallthru
          _
      $region12: #{resnet_fpn3_forward.18} parent=5 // pred_fallthru
        _
      %p151 = scmp.lt.s32.totalorder %s10, 2
      // Predicated region
      $region21: #{resnet_fpn3_forward.18} parent=5 // pred_check
        %p152 = pneg %p151
      $region22: #{resnet_fpn3_forward.18} parent=5 // pred_check_branch
        %154 = sbr.rel (%p152) target = $region24
      $region23: #{resnet_fpn3_forward.18} parent=5 // pred_region
        // Predicated region
        $region25: #{resnet_fpn3_forward.18} parent=23 // pred_check
          %p155 = pneg %p51
        $region26: #{resnet_fpn3_forward.18} parent=23 // pred_check_branch
          %157 = sbr.rel (%p155) target = $region28
        $region27: #{resnet_fpn3_forward.18} parent=23 // pred_region
          %s158 = sand.u32 %s41, 1
          %s159 = sand.u32 %s41, 1
          %s160 = smul.addr %s159, 80
          %s161 = scalar_lea.vmem [#allocation2], %s160
          %s162 = smul.u32 2, %s10
          %s163 = smul.addr %s162, 8
          %s164 = scalar_lea.vmem %s1, %s163
          // Predicated region
          $region29: #{resnet_fpn3_forward.18} parent=27 // pred_check
            _
          $region30: #{resnet_fpn3_forward.18} parent=27 // pred_check_branch
            %166 = sbr.rel (0) target = $region32
          $region31: #{resnet_fpn3_forward.18} parent=27 // pred_region
            // Predicated region
            $region33: #{resnet_fpn3_forward.18} parent=31 // pred_check
              _
            $region34: #{resnet_fpn3_forward.18} parent=31 // pred_check_branch
              %168 = sbr.rel (0) target = $region36
            $region35: #{resnet_fpn3_forward.18} parent=31 // pred_region
              loop: start=0, step=1, limit=1
              $region37: #{resnet_fpn3_forward.18} parent=35 // loop_pre_header
                _
              $region38: #{resnet_fpn3_forward.18} parent=35 // loop_header
                %s170 = sphi 0, %s174
                %p171 = scmp.ge.s32.totalorder %s170, 1
                %s175 = sphi %s164, %s164
                %s176 = sphi %s161, %s161
              $region39: #{resnet_fpn3_forward.18} parent=35 // loop_header_branch
                %173 = sbr.rel (%p171) target = $region43
              $region40: #{resnet_fpn3_forward.18} parent=35 // loop_body
                %v177 = vld [vmem:[%s175] sm:$0xff]
                %178 = vst [vmem:[%s176] sm:$0xff] %v177
                %v179 = vld [vmem:[%s175 + $0x8] sm:$0xff]
                %180 = vst [vmem:[%s176 + $0x8] sm:$0xff] %v179
                %v181 = vld [vmem:[%s175 + $0x20] sm:$0xff]
                %182 = vst [vmem:[%s176 + $0x10] sm:$0xff] %v181
                %v183 = vld [vmem:[%s175 + $0x28] sm:$0xff]
                %184 = vst [vmem:[%s176 + $0x18] sm:$0xff] %v183
                %v185 = vld [vmem:[%s175 + $0x40] sm:$0xff]
                %186 = vst [vmem:[%s176 + $0x20] sm:$0xff] %v185
                %v187 = vld [vmem:[%s175 + $0x48] sm:$0xff]
                %188 = vst [vmem:[%s176 + $0x28] sm:$0xff] %v187
                %v189 = vld [vmem:[%s175 + $0x60] sm:$0xff]
                %190 = vst [vmem:[%s176 + $0x30] sm:$0xff] %v189
                %v191 = vld [vmem:[%s175 + $0x68] sm:$0xff]
                %192 = vst [vmem:[%s176 + $0x38] sm:$0xff] %v191
                %v193 = vld [vmem:[%s175 + $0x80] sm:$0xff]
                %194 = vst [vmem:[%s176 + $0x40] sm:$0xff] %v193
                %v195 = vld [vmem:[%s175 + $0x88] sm:$0xff]
                %196 = vst [vmem:[%s176 + $0x48] sm:$0xff] %v195
              $region41: #{resnet_fpn3_forward.18} parent=35 // loop_footer
                %s174 = sadd.s32 1, %s170
              $region42: #{resnet_fpn3_forward.18} parent=35 // loop_footer_branch
                %169 = sbr.rel target = $region38
              $region43: #{resnet_fpn3_forward.18} parent=35 // loop_exit
                _
            $region36: #{resnet_fpn3_forward.18} parent=31 // pred_fallthru
              _
            // Predicated region
            $region44: #{resnet_fpn3_forward.18} parent=31 // pred_check
              _
            $region45: #{resnet_fpn3_forward.18} parent=31 // pred_check_branch
              %198 = sbr.rel target = $region47
            $region46: #{resnet_fpn3_forward.18} parent=31 // pred_region
              _
            $region47: #{resnet_fpn3_forward.18} parent=31 // pred_fallthru
              _
          $region32: #{resnet_fpn3_forward.18} parent=27 // pred_fallthru
            _
          %199 = vnop
        $region28: #{resnet_fpn3_forward.18} parent=23 // pred_fallthru
          _
        // Predicated region
        $region48: #{resnet_fpn3_forward.18} parent=23 // pred_check
          %p200 = pneg %p98
        $region49: #{resnet_fpn3_forward.18} parent=23 // pred_check_branch
          %202 = sbr.rel (%p200) target = $region51
        $region50: #{resnet_fpn3_forward.18} parent=23 // pred_region
          %s203 = smul.u32 2, %s10
          %p204 = scmp.lt.s32.totalorder %s203, 3
          %s205 = scalar_select %p204, %s203, 3
          %s206 = smul.addr %s205, 4
          %s207 = scalar_lea.vmem %s3, %s206
          %s208 = smul.u32 2, %s10
        $region51: #{resnet_fpn3_forward.18} parent=23 // pred_fallthru
          _
      $region24: #{resnet_fpn3_forward.18} parent=5 // pred_fallthru
        _
      %p209 = scmp.le.s32.totalorder 1, %s10
      %p210 = scmp.lt.s32.totalorder %s10, 3
      %p211 = pnand %p209, %p210
      %p212 = pneg %p211
      // Predicated region
      $region52: #{resnet_fpn3_forward.18} parent=5 // pred_check
        _
      $region53: #{resnet_fpn3_forward.18} parent=5 // pred_check_branch
        %214 = sbr.rel (%p211) target = $region55
      $region54: #{resnet_fpn3_forward.18} parent=5 // pred_region
        %s215 = ssub.s32 %s10, 1
        %s216 = sand.u32 %s44, 1
        %s217 = sand.u32 %s44, 1
        %s218 = smul.addr %s217, 80
        %s219 = scalar_lea.vmem [#allocation2], %s218
        // Predicated region
        $region56: #{resnet_fpn3_forward.18} parent=54 // pred_check
          %p220 = pneg %p57
        $region57: #{resnet_fpn3_forward.18} parent=54 // pred_check_branch
          %222 = sbr.rel (%p220) target = $region59
        $region58: #{resnet_fpn3_forward.18} parent=54 // pred_region
          _
        $region59: #{resnet_fpn3_forward.18} parent=54 // pred_fallthru
          _
        %p223 = pneg %p31
        %p224 = pneg %p28
        %s225 = sand.u32 %s44, 1
        %s226 = sand.u32 %s44, 1
        %s227 = smul.addr %s226, 80
        %s228 = scalar_lea.vmem [#allocation2], %s227
        %p229 = pneg %p57
        %p230 = pneg %p54
        %p231 = pneg %p78
        %p232 = pneg %p75
        %s233 = smul.u32 2, %s15
        %p234 = scmp.lt.s32.totalorder %s233, 3
        %s235 = scalar_select %p234, %s233, 3
        %s236 = smul.addr %s235, 4
        %s237 = scalar_lea.vmem %s3, %s236
        %p238 = pneg %p104
        %p239 = pneg %p101
        %p240 = pneg %p130
        %p241 = pneg %p127
        %s242 = smul.u32 2, %s15
        %p243 = scmp.lt.s32.totalorder %s242, 3
        %s244 = scalar_select %p243, %s242, 3
        %s245 = smul.addr %s244, 4
        %s246 = scalar_lea.vmem %s4, %s245
        %s247 = smul.u32 2, %s15
        %s248 = smul.u32 2, %s15
        %p249 = scmp.lt.s32.totalorder %s248, 3
        %s250 = scalar_select %p249, %s248, 3
        %s251 = smul.addr %s250, 4
        %s252 = scalar_lea.vmem %s3, %s251
        %s253 = smul.u32 2, %s15
        %s254 = smul.u32 2, %s15
        %p255 = scmp.lt.s32.totalorder %s254, 3
        %s256 = scalar_select %p255, %s254, 3
        %s257 = smul.addr %s256, 4
        %s258 = scalar_lea.vmem %s4, %s257
        %s259 = smul.u32 2, %s15
        %v260 = vld [vmem:[%s0] sm:$0xf]
        %v261 = vld [vmem:[%s219] sm:$0xff]
        %v262 = vld [vmem:[%s219 + $0x8] sm:$0xff]
        %v263 = vld [vmem:[%s219 + $0x10] sm:$0xff]
        %v264 = vld [vmem:[%s219 + $0x18] sm:$0xff]
        %v265 = vld [vmem:[%s219 + $0x20] sm:$0xff]
        %v266 = vld [vmem:[%s219 + $0x28] sm:$0xff]
        %v267 = vld [vmem:[%s219 + $0x30] sm:$0xff]
        %v268 = vld [vmem:[%s219 + $0x38] sm:$0xff]
        %v269 = vld [vmem:[%s219 + $0x40] sm:$0xf]
        %v270 = vld [vmem:[%s219 + $0x48] sm:$0xf]
        %v271 = vld [vmem:[%s2] sm:$0xf]
        %273 = vset.pattern.permute.xlu0 0
        %274 = vperm.xlu0 %273, %v271
        %v275 = vpop.permute.xlu0 %274
        %vm277 = vcmask 293888
        %v279 = vsel %vm277, %v260, 0
        %vm281 = vcmask 1043456
        %v283 = vsel %vm281, %v269, 0
        %v286 = vsel %vm281, %v270, 0
        %288 = vmatprep.subr.mxu0 %v262
        %289 = vmatpush1.msra.mxu0 %v261
        %290 = vmatprep.subr.mxu0 %v264
        %291 = vmatpush1.msra.mxu0 %v263
        %292 = vmatprep.subr.mxu0 %v266
        %293 = vmatpush1.msra.mxu0 %v265
        %294 = vmatprep.subr.mxu0 %v268
        %295 = vmatpush1.msra.mxu0 %v267
        %296 = vmatprep.subr.mxu0 %v286
        %297 = vmatpush1.msra.mxu0 %v283
        %298 = vmatprep.subr.mxu0 0.0
        %299 = vmatpush1.msra.mxu0 0.0
        %300 = vmatprep.subr.mxu0 0.0
        %301 = vmatpush1.msra.mxu0 0.0
        %302 = vmatprep.subr.mxu0 0.0
        %303 = vmatpush1.msra.mxu0 0.0
        %304 = vmatprep.subr.mxu0 0.0
        %305 = vmatpush1.msra.mxu0 0.0
        %306 = vmatprep.subr.mxu0 0.0
        %307 = vmatpush1.msra.mxu0 0.0
        %308 = vmatprep.subr.mxu0 0.0
        %309 = vmatpush1.msra.mxu0 0.0
        %310 = vmatprep.subr.mxu0 0.0
        %311 = vmatpush1.msra.mxu0 0.0
        %312 = vmatprep.subr.mxu0 0.0
        %313 = vmatpush1.msra.mxu0 0.0
        %314 = vmatprep.subr.mxu0 0.0
        %315 = vmatpush1.msra.mxu0 0.0
        %316 = vmatprep.subr.mxu0 0.0
        %317 = vmatpush1.msra.mxu0 0.0
        %318 = vmatprep.subr.mxu0 0.0
        %319 = vmatpush1.msra.mxu0 0.0
        %320 = vmatprep.subr.mxu0 0.0
        %321 = vmatpush1.msra.mxu0 0.0
        %322 = vmatprep.subr.mxu0 0.0
        %323 = vmatpush1.msra.mxu0 0.0
        %324 = vmatprep.subr.mxu0 0.0
        %325 = vmatpush1.msra.mxu0 0.0
        %326 = vmatprep.subr.mxu0 0.0
        %327 = vmatpush1.msra.mxu0 0.0
        %328 = vmatprep.subr.mxu0 0.0
        %329 = vmatpush1.msra.mxu0 0.0
        %330 = vmatprep.subr.mxu0 0.0
        %331 = vmatpush1.msra.mxu0 0.0
        %332 = vmatprep.subr.mxu0 0.0
        %333 = vmatpush1.msra.mxu0 0.0
        %334 = vmatprep.subr.mxu0 0.0
        %335 = vmatpush1.msra.mxu0 0.0
        %336 = vmatprep.subr.mxu0 0.0
        %337 = vmatpush1.msra.mxu0 0.0
        %338 = vmatprep.subr.mxu0 0.0
        %339 = vmatpush1.msra.mxu0 0.0
        %340 = vmatprep.subr.mxu0 0.0
        %341 = vmatpush1.msra.mxu0 0.0
        %342 = vmatprep.subr.mxu0 0.0
        %343 = vmatpush1.msra.mxu0 0.0
        %344 = vmatprep.subr.mxu0 0.0
        %345 = vmatpush1.msra.mxu0 0.0
        %346 = vmatprep.subr.mxu0 0.0
        %347 = vmatpush1.msra.mxu0 0.0
        %348 = vmatprep.subr.mxu0 0.0
        %349 = vmatpush1.msra.mxu0 0.0
        %350 = vmatprep.subr.mxu0 0.0
        %351 = vmatpush1.msra.mxu0 0.0
        %352 = vmatprep.mubr.f32.mxu0 0.0
        %353 = vmatmul.mubr.f32.gmra.mrb[0].mxu0 %v279
        %v354 = vpop.f32.mrb[0].mxu0
        %v355 = vadd.f32 %v275, %v354
        %v356 = vpop.f32.mrb[0].mxu0
        %v357 = vadd.f32 %v275, %v356
        %358 = vdwg.mxu0
        %v359 = vld [vmem:[%s252] sm:$0xff]
        %v361 = vcombine.high %v359, %v359
        %v363 = vadd.f32 %v355, %v359
        %v364 = vadd.f32 %v357, %v361
        %v367 = vcombine.low %v363, %v364
        %369 = vst [vmem:[%s258] sm:$0xff] %v367
        %s370 = smul.u32 2, %s15
        %p371 = scmp.lt.s32.totalorder %s370, 3
        %s372 = scalar_select %p371, %s370, 3
        %s373 = smul.addr %s372, 4
        %s374 = scalar_lea.vmem %s4, %s373
        // Predicated region
        $region60: #{resnet_fpn3_forward.18} parent=54 // pred_check
          %p375 = pneg %p127
        $region61: #{resnet_fpn3_forward.18} parent=54 // pred_check_branch
          %377 = sbr.rel (%p375) target = $region63
        $region62: #{resnet_fpn3_forward.18} parent=54 // pred_region
          %s378 = smul.u32 2, %s15
        $region63: #{resnet_fpn3_forward.18} parent=54 // pred_fallthru
          _
      $region55: #{resnet_fpn3_forward.18} parent=5 // pred_fallthru
        _
      %p379 = scmp.le.s32.totalorder 2, %s10
      // Predicated region
      $region64: #{resnet_fpn3_forward.18} parent=5 // pred_check
        %p380 = pneg %p379
      $region65: #{resnet_fpn3_forward.18} parent=5 // pred_check_branch
        %382 = sbr.rel (%p380) target = $region67
      $region66: #{resnet_fpn3_forward.18} parent=5 // pred_region
        %s383 = ssub.s32 %s10, 2
        // Predicated region
        $region68: #{resnet_fpn3_forward.18} parent=66 // pred_check
          %p384 = pneg %p133
        $region69: #{resnet_fpn3_forward.18} parent=66 // pred_check_branch
          %386 = sbr.rel (%p384) target = $region71
        $region70: #{resnet_fpn3_forward.18} parent=66 // pred_region
          %s387 = smul.u32 2, %s16
          %p388 = scmp.lt.s32.totalorder %s387, 3
          %s389 = scalar_select %p388, %s387, 3
          %s390 = smul.addr %s389, 4
          %s391 = scalar_lea.vmem %s4, %s390
        $region71: #{resnet_fpn3_forward.18} parent=66 // pred_fallthru
          _
      $region67: #{resnet_fpn3_forward.18} parent=5 // pred_fallthru
        _
    $region6: #{resnet_fpn3_forward.18} parent=1 // loop_footer
      %s14 = sadd.s32 1, %s10
    $region7: #{resnet_fpn3_forward.18} parent=1 // loop_footer_branch
      %9 = sbr.rel target = $region3
    $region8: #{resnet_fpn3_forward.18} parent=1 // loop_exit
      _

// kernel: resnet_fpn3_forward.19
$region0: #{resnet_fpn3_forward.19}
  #allocation0 [shape = 'u32[]', space=smem, size = 0x4, offset = 0x4, fixed_abs, tag = 'smem constant byte address 0x4 - core index']
  #allocation1 [shape = 'u32[144,128]{1,0:T(1,128)}', space=vmem, size = 0x12000, scoped, tag = 'internal scratch']
  %s0 = inlined_call_operand.vmem [shape: f32[72,4], index: 0, kind: input, shape index: {}]
  %s1 = inlined_call_operand.vmem [shape: f32[4,512], index: 1, kind: input, shape index: {}]
  %s2 = inlined_call_operand.vmem [shape: f32[72,512], index: 2, kind: output, shape index: {}]
  %s3 = sld [smem:[#allocation0]]
  $region60: #{resnet_fpn3_forward.19} parent=0
    _
  %s5 = ssub.s32 1, %s3
  %s6 = scalar_select 0, %s5, %s3
  $region1: #{resnet_fpn3_forward.19} parent=0
    #allocation2 [shape = 'u8[147456]{0}', space=vmem, size = 0x24000, scoped, tag = 'output window, operand 0']
    loop: start=0, step=1, limit=4
    $region2: #{resnet_fpn3_forward.19} parent=1 // loop_pre_header
      _
    $region3: #{resnet_fpn3_forward.19} parent=1 // loop_header
      %s8 = sphi 0, %s12
      %p9 = scmp.ge.s32.totalorder %s8, 4
      %s16 = sphi 0, %s16
      %s18 = sphi 0, %s16
      %s19 = sphi 0, %s18
      %s33 = sphi 0, %s19
      %s39 = sphi 0, %s41
      %s42 = sphi 0, %s39
      %s43 = sphi 0, %s42
      %s59 = sphi 0, %s43
      %s65 = sphi 0, %s67
      %s68 = sphi 0, %s65
      %s69 = sphi 0, %s68
      %s85 = sphi 0, %s69
    $region4: #{resnet_fpn3_forward.19} parent=1 // loop_header_branch
      %11 = sbr.rel (%p9) target = $region8
    $region5: #{resnet_fpn3_forward.19} parent=1 // loop_body
      %s13 = ssub.s32 %s8, 1
      %s14 = ssub.s32 %s8, 2
      %s15 = sadd.s32 %s8, 1
      %s17 = sadd.s32 %s16, 1
      %p20 = scmp.eq.s32.totalorder %s8, 1
      %p21 = scmp.ne.s32.totalorder %s16, %s18
      %p22 = scmp.eq.s32.totalorder %s8, 0
      %p23 = por %p21, %p22
      %p24 = scmp.ne.s32.totalorder %s16, %s18
      %p25 = scmp.eq.s32.totalorder %s13, 1
      %p26 = por %p24, %p25
      %p27 = scmp.ne.s32.totalorder %s18, %s19
      %p28 = scmp.eq.s32.totalorder %s13, 0
      %p29 = por %p27, %p28
      %p30 = scmp.ne.s32.totalorder %s18, %s19
      %p31 = scmp.eq.s32.totalorder %s14, 1
      %p32 = por %p30, %p31
      %p34 = scmp.ne.s32.totalorder %s19, %s33
      %p35 = scmp.eq.s32.totalorder %s14, 0
      %p36 = por %p34, %p35
      %s37 = ssub.s32 %s8, %s15
      %p38 = scmp.eq.s32.totalorder %s37, 0
      %s40 = sadd.s32 %s39, 1
      %s41 = scalar_select %p38, %s39, %s40
      %p44 = pneg %p38
      %p45 = scmp.eq.s32.totalorder %s8, 1
      %p46 = por %p44, %p45
      %p47 = scmp.ne.s32.totalorder %s39, %s42
      %p48 = scmp.eq.s32.totalorder %s8, 0
      %p49 = por %p47, %p48
      %p50 = scmp.ne.s32.totalorder %s39, %s42
      %p51 = scmp.eq.s32.totalorder %s13, 1
      %p52 = por %p50, %p51
      %p53 = scmp.ne.s32.totalorder %s42, %s43
      %p54 = scmp.eq.s32.totalorder %s13, 0
      %p55 = por %p53, %p54
      %p56 = scmp.ne.s32.totalorder %s42, %s43
      %p57 = scmp.eq.s32.totalorder %s14, 1
      %p58 = por %p56, %p57
      %p60 = scmp.ne.s32.totalorder %s43, %s59
      %p61 = scmp.eq.s32.totalorder %s14, 0
      %p62 = por %p60, %p61
      %s63 = ssub.s32 %s8, %s15
      %p64 = scmp.eq.s32.totalorder %s63, 0
      %s66 = sadd.s32 %s65, 1
      %s67 = scalar_select %p64, %s65, %s66
      %p70 = pneg %p64
      %p71 = scmp.eq.s32.totalorder %s8, 1
      %p72 = por %p70, %p71
      %p73 = scmp.ne.s32.totalorder %s65, %s68
      %p74 = scmp.eq.s32.totalorder %s8, 0
      %p75 = por %p73, %p74
      %p76 = scmp.ne.s32.totalorder %s65, %s68
      %p77 = scmp.eq.s32.totalorder %s13, 1
      %p78 = por %p76, %p77
      %p79 = scmp.ne.s32.totalorder %s68, %s69
      %p80 = scmp.eq.s32.totalorder %s13, 0
      %p81 = por %p79, %p80
      %p82 = scmp.ne.s32.totalorder %s68, %s69
      %p83 = scmp.eq.s32.totalorder %s14, 1
      %p84 = por %p82, %p83
      %p86 = scmp.ne.s32.totalorder %s69, %s85
      %p87 = scmp.eq.s32.totalorder %s14, 0
      %p88 = por %p86, %p87
      %p89 = scmp.le.s32.totalorder 1, %s8
      %p90 = scmp.lt.s32.totalorder %s8, 3
      %p91 = pnand %p89, %p90
      %p92 = pneg %p91
      // Predicated region
      $region9: #{resnet_fpn3_forward.19} parent=5 // pred_check
        _
      $region10: #{resnet_fpn3_forward.19} parent=5 // pred_check_branch
        %94 = sbr.rel (%p91) target = $region12
      $region11: #{resnet_fpn3_forward.19} parent=5 // pred_region
        %s95 = ssub.s32 %s8, 1
        // Predicated region
        $region13: #{resnet_fpn3_forward.19} parent=11 // pred_check
          %p96 = pneg %p29
        $region14: #{resnet_fpn3_forward.19} parent=11 // pred_check_branch
          %98 = sbr.rel (%p96) target = $region16
        $region15: #{resnet_fpn3_forward.19} parent=11 // pred_region
          _
        $region16: #{resnet_fpn3_forward.19} parent=11 // pred_fallthru
          _
      $region12: #{resnet_fpn3_forward.19} parent=5 // pred_fallthru
        _
      %p99 = scmp.lt.s32.totalorder %s8, 2
      // Predicated region
      $region17: #{resnet_fpn3_forward.19} parent=5 // pred_check
        %p100 = pneg %p99
      $region18: #{resnet_fpn3_forward.19} parent=5 // pred_check_branch
        %102 = sbr.rel (%p100) target = $region20
      $region19: #{resnet_fpn3_forward.19} parent=5 // pred_region
        // Predicated region
        $region21: #{resnet_fpn3_forward.19} parent=19 // pred_check
          %p103 = pneg %p49
        $region22: #{resnet_fpn3_forward.19} parent=19 // pred_check_branch
          %105 = sbr.rel (%p103) target = $region24
        $region23: #{resnet_fpn3_forward.19} parent=19 // pred_region
          %s106 = smul.u32 2, %s8
          %p107 = scmp.lt.s32.totalorder %s106, 3
          %s108 = scalar_select %p107, %s106, 3
          %s109 = smul.addr %s108, 4
          %s110 = scalar_lea.vmem %s1, %s109
          %s111 = smul.u32 2, %s8
        $region24: #{resnet_fpn3_forward.19} parent=19 // pred_fallthru
          _
      $region20: #{resnet_fpn3_forward.19} parent=5 // pred_fallthru
        _
      %p112 = scmp.le.s32.totalorder 1, %s8
      %p113 = scmp.lt.s32.totalorder %s8, 3
      %p114 = pnand %p112, %p113
      %p115 = pneg %p114
      // Predicated region
      $region25: #{resnet_fpn3_forward.19} parent=5 // pred_check
        _
      $region26: #{resnet_fpn3_forward.19} parent=5 // pred_check_branch
        %117 = sbr.rel (%p114) target = $region28
      $region27: #{resnet_fpn3_forward.19} parent=5 // pred_region
        %s118 = ssub.s32 %s8, 1
        %p119 = pneg %p29
        %p120 = pneg %p26
        %s121 = smul.u32 2, %s13
        %p122 = scmp.lt.s32.totalorder %s121, 3
        %s123 = scalar_select %p122, %s121, 3
        %s124 = smul.addr %s123, 4
        %s125 = scalar_lea.vmem %s1, %s124
        %p126 = pneg %p55
        %p127 = pneg %p52
        %p128 = pneg %p81
        %p129 = pneg %p78
        %s130 = sand.u32 %s68, 1
        %s131 = sand.u32 %s68, 1
        %s132 = smul.addr %s131, 144
        %s133 = scalar_lea.vmem [#allocation2], %s132
        %s134 = smul.u32 2, %s13
        %p135 = scmp.lt.s32.totalorder %s134, 3
        %s136 = scalar_select %p135, %s134, 3
        %s137 = smul.addr %s136, 4
        %s138 = scalar_lea.vmem %s1, %s137
        %s139 = smul.u32 2, %s13
        %s140 = smul.u32 2, %s13
        %v141 = vld [vmem:[%s0] sm:$0xff]
        %v142 = vld [vmem:[%s0 + $0x8] sm:$0xff]
        %v143 = vld [vmem:[%s0 + $0x10] sm:$0xff]
        %v144 = vld [vmem:[%s0 + $0x18] sm:$0xff]
        %v145 = vld [vmem:[%s0 + $0x20] sm:$0xff]
        %v146 = vld [vmem:[%s0 + $0x28] sm:$0xff]
        %v147 = vld [vmem:[%s0 + $0x30] sm:$0xff]
        %v148 = vld [vmem:[%s0 + $0x38] sm:$0xff]
        %v149 = vld [vmem:[%s0 + $0x40] sm:$0xff]
        %v150 = vld [vmem:[%s138] sm:$0xff]
        %v152 = vcombine.high %v150, %v150
        %vm153 = vcmask 31744
        %v155 = vsel %vm153, %v141, 0
        %v158 = vsel %vm153, %v142, 0
        %v161 = vsel %vm153, %v143, 0
        %v164 = vsel %vm153, %v144, 0
        %v167 = vsel %vm153, %v145, 0
        %v170 = vsel %vm153, %v146, 0
        %v173 = vsel %vm153, %v147, 0
        %v176 = vsel %vm153, %v148, 0
        %v179 = vsel %vm153, %v149, 0
        %vm181 = vcmask 1043456
        %v182 = vsel %vm181, %v150, 0
        %v184 = vsel %vm181, %v152, 0
        %186 = vmatprep.subr.mxu0 %v184
        %187 = vmatpush1.msra.mxu0 %v182
        %188 = vmatprep.subr.mxu0 0.0
        %189 = vmatpush1.msra.mxu0 0.0
        %190 = vmatprep.subr.mxu0 0.0
        %191 = vmatpush1.msra.mxu0 0.0
        %192 = vmatprep.subr.mxu0 0.0
        %193 = vmatpush1.msra.mxu0 0.0
        %194 = vmatprep.subr.mxu0 0.0
        %195 = vmatpush1.msra.mxu0 0.0
        %196 = vmatprep.subr.mxu0 0.0
        %197 = vmatpush1.msra.mxu0 0.0
        %198 = vmatprep.subr.mxu0 0.0
        %199 = vmatpush1.msra.mxu0 0.0
        %200 = vmatprep.subr.mxu0 0.0
        %201 = vmatpush1.msra.mxu0 0.0
        %202 = vmatprep.subr.mxu0 0.0
        %203 = vmatpush1.msra.mxu0 0.0
        %204 = vmatprep.subr.mxu0 0.0
        %205 = vmatpush1.msra.mxu0 0.0
        %206 = vmatprep.subr.mxu0 0.0
        %207 = vmatpush1.msra.mxu0 0.0
        %208 = vmatprep.subr.mxu0 0.0
        %209 = vmatpush1.msra.mxu0 0.0
        %210 = vmatprep.subr.mxu0 0.0
        %211 = vmatpush1.msra.mxu0 0.0
        %212 = vmatprep.subr.mxu0 0.0
        %213 = vmatpush1.msra.mxu0 0.0
        %214 = vmatprep.subr.mxu0 0.0
        %215 = vmatpush1.msra.mxu0 0.0
        %216 = vmatprep.subr.mxu0 0.0
        %217 = vmatpush1.msra.mxu0 0.0
        %218 = vmatprep.subr.mxu0 0.0
        %219 = vmatpush1.msra.mxu0 0.0
        %220 = vmatprep.subr.mxu0 0.0
        %221 = vmatpush1.msra.mxu0 0.0
        %222 = vmatprep.subr.mxu0 0.0
        %223 = vmatpush1.msra.mxu0 0.0
        %224 = vmatprep.subr.mxu0 0.0
        %225 = vmatpush1.msra.mxu0 0.0
        %226 = vmatprep.subr.mxu0 0.0
        %227 = vmatpush1.msra.mxu0 0.0
        %228 = vmatprep.subr.mxu0 0.0
        %229 = vmatpush1.msra.mxu0 0.0
        %230 = vmatprep.subr.mxu0 0.0
        %231 = vmatpush1.msra.mxu0 0.0
        %232 = vmatprep.subr.mxu0 0.0
        %233 = vmatpush1.msra.mxu0 0.0
        %234 = vmatprep.subr.mxu0 0.0
        %235 = vmatpush1.msra.mxu0 0.0
        %236 = vmatprep.subr.mxu0 0.0
        %237 = vmatpush1.msra.mxu0 0.0
        %238 = vmatprep.subr.mxu0 0.0
        %239 = vmatpush1.msra.mxu0 0.0
        %240 = vmatprep.subr.mxu0 0.0
        %241 = vmatpush1.msra.mxu0 0.0
        %242 = vmatprep.subr.mxu0 0.0
        %243 = vmatpush1.msra.mxu0 0.0
        %244 = vmatprep.subr.mxu0 0.0
        %245 = vmatpush1.msra.mxu0 0.0
        %246 = vmatprep.subr.mxu0 0.0
        %247 = vmatpush1.msra.mxu0 0.0
        %248 = vmatprep.subr.mxu0 0.0
        %249 = vmatpush1.msra.mxu0 0.0
        %250 = vmatprep.mubr.f32.mxu0 0.0
        %251 = vmatmul.mubr.f32.gmra.mrb[0].mxu0 %v155
        %v252 = vpop.f32.mrb[0].mxu0
        %v253 = vadd.f32 0.0, %v252
        %v254 = vpop.f32.mrb[0].mxu0
        %v255 = vadd.f32 0.0, %v254
        %256 = vmatprep.mubr.f32.mxu0 0.0
        %257 = vmatmul.mubr.f32.gmra.mrb[0].mxu0 %v158
        %v258 = vpop.f32.mrb[0].mxu0
        %v259 = vadd.f32 0.0, %v258
        %v260 = vpop.f32.mrb[0].mxu0
        %v261 = vadd.f32 0.0, %v260
        %262 = vmatprep.mubr.f32.mxu0 0.0
        %263 = vmatmul.mubr.f32.gmra.mrb[0].mxu0 %v161
        %v264 = vpop.f32.mrb[0].mxu0
        %v265 = vadd.f32 0.0, %v264
        %v266 = vpop.f32.mrb[0].mxu0
        %v267 = vadd.f32 0.0, %v266
        %268 = vmatprep.mubr.f32.mxu0 0.0
        %269 = vmatmul.mubr.f32.gmra.mrb[0].mxu0 %v164
        %v270 = vpop.f32.mrb[0].mxu0
        %v271 = vadd.f32 0.0, %v270
        %v272 = vpop.f32.mrb[0].mxu0
        %v273 = vadd.f32 0.0, %v272
        %274 = vmatprep.mubr.f32.mxu0 0.0
        %275 = vmatmul.mubr.f32.gmra.mrb[0].mxu0 %v167
        %v276 = vpop.f32.mrb[0].mxu0
        %v277 = vadd.f32 0.0, %v276
        %v278 = vpop.f32.mrb[0].mxu0
        %v279 = vadd.f32 0.0, %v278
        %280 = vmatprep.mubr.f32.mxu0 0.0
        %281 = vmatmul.mubr.f32.gmra.mrb[0].mxu0 %v170
        %v282 = vpop.f32.mrb[0].mxu0
        %v283 = vadd.f32 0.0, %v282
        %v284 = vpop.f32.mrb[0].mxu0
        %v285 = vadd.f32 0.0, %v284
        %286 = vmatprep.mubr.f32.mxu0 0.0
        %287 = vmatmul.mubr.f32.gmra.mrb[0].mxu0 %v173
        %v288 = vpop.f32.mrb[0].mxu0
        %v289 = vadd.f32 0.0, %v288
        %v290 = vpop.f32.mrb[0].mxu0
        %v291 = vadd.f32 0.0, %v290
        %292 = vmatprep.mubr.f32.mxu0 0.0
        %293 = vmatmul.mubr.f32.gmra.mrb[0].mxu0 %v176
        %v294 = vpop.f32.mrb[0].mxu0
        %v295 = vadd.f32 0.0, %v294
        %v296 = vpop.f32.mrb[0].mxu0
        %v297 = vadd.f32 0.0, %v296
        %298 = vmatprep.mubr.f32.mxu0 0.0
        %299 = vmatmul.mubr.f32.gmra.mrb[0].mxu0 %v179
        %v300 = vpop.f32.mrb[0].mxu0
        %v301 = vadd.f32 0.0, %v300
        %v302 = vpop.f32.mrb[0].mxu0
        %v303 = vadd.f32 0.0, %v302
        %304 = vdwg.mxu0
        %305 = vst [vmem:[%s133] sm:$0xff] %v253
        %306 = vst [vmem:[%s133 + $0x8] sm:$0xff] %v255
        %307 = vst [vmem:[%s133 + $0x10] sm:$0xff] %v259
        %308 = vst [vmem:[%s133 + $0x18] sm:$0xff] %v261
        %309 = vst [vmem:[%s133 + $0x20] sm:$0xff] %v265
        %310 = vst [vmem:[%s133 + $0x28] sm:$0xff] %v267
        %311 = vst [vmem:[%s133 + $0x30] sm:$0xff] %v271
        %312 = vst [vmem:[%s133 + $0x38] sm:$0xff] %v273
        %313 = vst [vmem:[%s133 + $0x40] sm:$0xff] %v277
        %314 = vst [vmem:[%s133 + $0x48] sm:$0xff] %v279
        %315 = vst [vmem:[%s133 + $0x50] sm:$0xff] %v283
        %316 = vst [vmem:[%s133 + $0x58] sm:$0xff] %v285
        %317 = vst [vmem:[%s133 + $0x60] sm:$0xff] %v289
        %318 = vst [vmem:[%s133 + $0x68] sm:$0xff] %v291
        %319 = vst [vmem:[%s133 + $0x70] sm:$0xff] %v295
        %320 = vst [vmem:[%s133 + $0x78] sm:$0xff] %v297
        %321 = vst [vmem:[%s133 + $0x80] sm:$0xff] %v301
        %322 = vst [vmem:[%s133 + $0x88] sm:$0xff] %v303
        %s323 = sand.u32 %s68, 1
        %s324 = sand.u32 %s68, 1
        %s325 = smul.addr %s324, 144
        %s326 = scalar_lea.vmem [#allocation2], %s325
        // Predicated region
        $region29: #{resnet_fpn3_forward.19} parent=27 // pred_check
          %p327 = pneg %p78
        $region30: #{resnet_fpn3_forward.19} parent=27 // pred_check_branch
          %329 = sbr.rel (%p327) target = $region32
        $region31: #{resnet_fpn3_forward.19} parent=27 // pred_region
          %s330 = smul.u32 2, %s13
          %s331 = smul.addr %s330, 8
          %s332 = scalar_lea.vmem %s2, %s331
          // Predicated region
          $region33: #{resnet_fpn3_forward.19} parent=31 // pred_check
            _
          $region34: #{resnet_fpn3_forward.19} parent=31 // pred_check_branch
            %334 = sbr.rel (0) target = $region36
          $region35: #{resnet_fpn3_forward.19} parent=31 // pred_region
            // Predicated region
            $region37: #{resnet_fpn3_forward.19} parent=35 // pred_check
              _
            $region38: #{resnet_fpn3_forward.19} parent=35 // pred_check_branch
              %336 = sbr.rel (0) target = $region40
            $region39: #{resnet_fpn3_forward.19} parent=35 // pred_region
              loop: start=0, step=1, limit=1
              $region41: #{resnet_fpn3_forward.19} parent=39 // loop_pre_header
                _
              $region42: #{resnet_fpn3_forward.19} parent=39 // loop_header
                %s338 = sphi 0, %s342
                %p339 = scmp.ge.s32.totalorder %s338, 1
                %s343 = sphi %s326, %s326
                %s344 = sphi %s332, %s332
              $region43: #{resnet_fpn3_forward.19} parent=39 // loop_header_branch
                %341 = sbr.rel (%p339) target = $region47
              $region44: #{resnet_fpn3_forward.19} parent=39 // loop_body
                %v345 = vld [vmem:[%s343] sm:$0xff]
                %346 = vst [vmem:[%s344] sm:$0xff] %v345
                %v347 = vld [vmem:[%s343 + $0x8] sm:$0xff]
                %348 = vst [vmem:[%s344 + $0x8] sm:$0xff] %v347
                %v349 = vld [vmem:[%s343 + $0x10] sm:$0xff]
                %350 = vst [vmem:[%s344 + $0x20] sm:$0xff] %v349
                %v351 = vld [vmem:[%s343 + $0x18] sm:$0xff]
                %352 = vst [vmem:[%s344 + $0x28] sm:$0xff] %v351
                %v353 = vld [vmem:[%s343 + $0x20] sm:$0xff]
                %354 = vst [vmem:[%s344 + $0x40] sm:$0xff] %v353
                %v355 = vld [vmem:[%s343 + $0x28] sm:$0xff]
                %356 = vst [vmem:[%s344 + $0x48] sm:$0xff] %v355
                %v357 = vld [vmem:[%s343 + $0x30] sm:$0xff]
                %358 = vst [vmem:[%s344 + $0x60] sm:$0xff] %v357
                %v359 = vld [vmem:[%s343 + $0x38] sm:$0xff]
                %360 = vst [vmem:[%s344 + $0x68] sm:$0xff] %v359
                %v361 = vld [vmem:[%s343 + $0x40] sm:$0xff]
                %362 = vst [vmem:[%s344 + $0x80] sm:$0xff] %v361
                %v363 = vld [vmem:[%s343 + $0x48] sm:$0xff]
                %364 = vst [vmem:[%s344 + $0x88] sm:$0xff] %v363
                %v365 = vld [vmem:[%s343 + $0x50] sm:$0xff]
                %366 = vst [vmem:[%s344 + $0xa0] sm:$0xff] %v365
                %v367 = vld [vmem:[%s343 + $0x58] sm:$0xff]
                %368 = vst [vmem:[%s344 + $0xa8] sm:$0xff] %v367
                %v369 = vld [vmem:[%s343 + $0x60] sm:$0xff]
                %370 = vst [vmem:[%s344 + $0xc0] sm:$0xff] %v369
                %v371 = vld [vmem:[%s343 + $0x68] sm:$0xff]
                %372 = vst [vmem:[%s344 + $0xc8] sm:$0xff] %v371
                %v373 = vld [vmem:[%s343 + $0x70] sm:$0xff]
                %374 = vst [vmem:[%s344 + $0xe0] sm:$0xff] %v373
                %v375 = vld [vmem:[%s343 + $0x78] sm:$0xff]
                %376 = vst [vmem:[%s344 + $0xe8] sm:$0xff] %v375
                %v377 = vld [vmem:[%s343 + $0x80] sm:$0xff]
                %378 = vst [vmem:[%s344 + $0x100] sm:$0xff] %v377
                %v379 = vld [vmem:[%s343 + $0x88] sm:$0xff]
                %380 = vst [vmem:[%s344 + $0x108] sm:$0xff] %v379
              $region45: #{resnet_fpn3_forward.19} parent=39 // loop_footer
                %s342 = sadd.s32 1, %s338
              $region46: #{resnet_fpn3_forward.19} parent=39 // loop_footer_branch
                %337 = sbr.rel target = $region42
              $region47: #{resnet_fpn3_forward.19} parent=39 // loop_exit
                _
            $region40: #{resnet_fpn3_forward.19} parent=35 // pred_fallthru
              _
            // Predicated region
            $region48: #{resnet_fpn3_forward.19} parent=35 // pred_check
              _
            $region49: #{resnet_fpn3_forward.19} parent=35 // pred_check_branch
              %382 = sbr.rel target = $region51
            $region50: #{resnet_fpn3_forward.19} parent=35 // pred_region
              _
            $region51: #{resnet_fpn3_forward.19} parent=35 // pred_fallthru
              _
          $region36: #{resnet_fpn3_forward.19} parent=31 // pred_fallthru
            _
          %383 = vnop
        $region32: #{resnet_fpn3_forward.19} parent=27 // pred_fallthru
          _
      $region28: #{resnet_fpn3_forward.19} parent=5 // pred_fallthru
        _
      %p384 = scmp.le.s32.totalorder 2, %s8
      // Predicated region
      $region52: #{resnet_fpn3_forward.19} parent=5 // pred_check
        %p385 = pneg %p384
      $region53: #{resnet_fpn3_forward.19} parent=5 // pred_check_branch
        %387 = sbr.rel (%p385) target = $region55
      $region54: #{resnet_fpn3_forward.19} parent=5 // pred_region
        %s388 = ssub.s32 %s8, 2
        // Predicated region
        $region56: #{resnet_fpn3_forward.19} parent=54 // pred_check
          %p389 = pneg %p84
        $region57: #{resnet_fpn3_forward.19} parent=54 // pred_check_branch
          %391 = sbr.rel (%p389) target = $region59
        $region58: #{resnet_fpn3_forward.19} parent=54 // pred_region
          %s392 = sand.u32 %s69, 1
          %s393 = sand.u32 %s69, 1
          %s394 = smul.addr %s393, 144
          %s395 = scalar_lea.vmem [#allocation2], %s394
        $region59: #{resnet_fpn3_forward.19} parent=54 // pred_fallthru
          _
      $region55: #{resnet_fpn3_forward.19} parent=5 // pred_fallthru
        _
    $region6: #{resnet_fpn3_forward.19} parent=1 // loop_footer
      %s12 = sadd.s32 1, %s8
    $region7: #{resnet_fpn3_forward.19} parent=1 // loop_footer_branch
      %7 = sbr.rel target = $region3
    $region8: #{resnet_fpn3_forward.19} parent=1 // loop_exit
      _

// kernel: resnet_fpn3_forward.20
$region0: #{resnet_fpn3_forward.20}
  #allocation0 [shape = 'u32[]', space=smem, size = 0x4, offset = 0x4, fixed_abs, tag = 'smem constant byte address 0x4 - core index']
  #allocation1 [shape = 'u32[144,128]{1,0:T(1,128)}', space=vmem, size = 0x12000, scoped, tag = 'internal scratch']
  %s0 = inlined_call_operand.vmem [shape: f32[4,36], index: 0, kind: input, shape index: {}]
  %s1 = inlined_call_operand.vmem [shape: f32[36,128], index: 1, kind: input, shape index: {}]
  %s2 = inlined_call_operand.vmem [shape: f32[4,1], index: 2, kind: input, shape index: {}]
  %s3 = inlined_call_operand.vmem [shape: f32[4,128], index: 3, kind: output, shape index: {}]
  %s4 = sld [smem:[#allocation0]]
  $region22: #{resnet_fpn3_forward.20} parent=0
    _
  %s6 = ssub.s32 1, %s4
  %s7 = scalar_select 0, %s6, %s4
  // Predicated region
  $region2: #{resnet_fpn3_forward.20} parent=0 // pred_check
    _
  $region3: #{resnet_fpn3_forward.20} parent=0 // pred_check_branch
    %9 = sbr.rel (0) target = $region5
  $region4: #{resnet_fpn3_forward.20} parent=0 // pred_region
    _
  $region5: #{resnet_fpn3_forward.20} parent=0 // pred_fallthru
    _
  // Predicated region
  $region6: #{resnet_fpn3_forward.20} parent=0 // pred_check
    _
  $region7: #{resnet_fpn3_forward.20} parent=0 // pred_check_branch
    %11 = sbr.rel (0) target = $region9
  $region8: #{resnet_fpn3_forward.20} parent=0 // pred_region
    _
  $region9: #{resnet_fpn3_forward.20} parent=0 // pred_fallthru
    _
  // Predicated region
  $region10: #{resnet_fpn3_forward.20} parent=0 // pred_check
    _
  $region11: #{resnet_fpn3_forward.20} parent=0 // pred_check_branch
    %13 = sbr.rel (0) target = $region13
  $region12: #{resnet_fpn3_forward.20} parent=0 // pred_region
    _
  $region13: #{resnet_fpn3_forward.20} parent=0 // pred_fallthru
    _
  %v14 = vld [vmem:[%s0] sm:$0xf]
  %v15 = vld [vmem:[%s1] sm:$0xff]
  %v16 = vld [vmem:[%s1 + $0x8] sm:$0xff]
  %v17 = vld [vmem:[%s1 + $0x10] sm:$0xff]
  %v18 = vld [vmem:[%s1 + $0x18] sm:$0xff]
  %v19 = vld [vmem:[%s1 + $0x20] sm:$0xf]
  %v20 = vld [vmem:[%s2] sm:$0xf]
  %22 = vset.pattern.permute.xlu0 0
  %23 = vperm.xlu0 %22, %v20
  %v24 = vpop.permute.xlu0 %23
  %vm26 = vcmask 293888
  %v28 = vsel %vm26, %v14, 0
  %vm30 = vcmask 1043456
  %v32 = vsel %vm30, %v19, 0
  %34 = vmatprep.subr.mxu0 0.0
  %35 = vmatpush1.msra.mxu0 %v15
  %36 = vmatprep.subr.mxu0 0.0
  %37 = vmatpush1.msra.mxu0 %v16
  %38 = vmatprep.subr.mxu0 0.0
  %39 = vmatpush1.msra.mxu0 %v17
  %40 = vmatprep.subr.mxu0 0.0
  %41 = vmatpush1.msra.mxu0 %v18
  %42 = vmatprep.subr.mxu0 0.0
  %43 = vmatpush1.msra.mxu0 %v32
  %44 = vmatprep.subr.mxu0 0.0
  %45 = vmatpush1.msra.mxu0 0.0
  %46 = vmatprep.subr.mxu0 0.0
  %47 = vmatpush1.msra.mxu0 0.0
  %48 = vmatprep.subr.mxu0 0.0
  %49 = vmatpush1.msra.mxu0 0.0
  %50 = vmatprep.subr.mxu0 0.0
  %51 = vmatpush1.msra.mxu0 0.0
  %52 = vmatprep.subr.mxu0 0.0
  %53 = vmatpush1.msra.mxu0 0.0
  %54 = vmatprep.subr.mxu0 0.0
  %55 = vmatpush1.msra.mxu0 0.0
  %56 = vmatprep.subr.mxu0 0.0
  %57 = vmatpush1.msra.mxu0 0.0
  %58 = vmatprep.subr.mxu0 0.0
  %59 = vmatpush1.msra.mxu0 0.0
  %60 = vmatprep.subr.mxu0 0.0
  %61 = vmatpush1.msra.mxu0 0.0
  %62 = vmatprep.subr.mxu0 0.0
  %63 = vmatpush1.msra.mxu0 0.0
  %64 = vmatprep.subr.mxu0 0.0
  %65 = vmatpush1.msra.mxu0 0.0
  %66 = vmatprep.subr.mxu0 0.0
  %67 = vmatpush1.msra.mxu0 0.0
  %68 = vmatprep.subr.mxu0 0.0
  %69 = vmatpush1.msra.mxu0 0.0
  %70 = vmatprep.subr.mxu0 0.0
  %71 = vmatpush1.msra.mxu0 0.0
  %72 = vmatprep.subr.mxu0 0.0
  %73 = vmatpush1.msra.mxu0 0.0
  %74 = vmatprep.subr.mxu0 0.0
  %75 = vmatpush1.msra.mxu0 0.0
  %76 = vmatprep.subr.mxu0 0.0
  %77 = vmatpush1.msra.mxu0 0.0
  %78 = vmatprep.subr.mxu0 0.0
  %79 = vmatpush1.msra.mxu0 0.0
  %80 = vmatprep.subr.mxu0 0.0
  %81 = vmatpush1.msra.mxu0 0.0
  %82 = vmatprep.subr.mxu0 0.0
  %83 = vmatpush1.msra.mxu0 0.0
  %84 = vmatprep.subr.mxu0 0.0
  %85 = vmatpush1.msra.mxu0 0.0
  %86 = vmatprep.subr.mxu0 0.0
  %87 = vmatpush1.msra.mxu0 0.0
  %88 = vmatprep.subr.mxu0 0.0
  %89 = vmatpush1.msra.mxu0 0.0
  %90 = vmatprep.subr.mxu0 0.0
  %91 = vmatpush1.msra.mxu0 0.0
  %92 = vmatprep.subr.mxu0 0.0
  %93 = vmatpush1.msra.mxu0 0.0
  %94 = vmatprep.subr.mxu0 0.0
  %95 = vmatpush1.msra.mxu0 0.0
  %96 = vmatprep.subr.mxu0 0.0
  %97 = vmatpush1.msra.mxu0 0.0
  %98 = vmatprep.mubr.f32.mxu0 0.0
  %99 = vmatmul.mubr.f32.gmra.mrb[0].mxu0 %v28
  %v100 = vpop.f32.mrb[0].mxu0
  %v101 = vadd.f32 %v24, %v100
  %v102 = vpop.f32.mrb[0].mxu0
  %103 = vdwg.mxu0
  %104 = vst [vmem:[%s3] sm:$0xf] %v101
  // Predicated region
  $region14: #{resnet_fpn3_forward.20} parent=0 // pred_check
    _
  $region15: #{resnet_fpn3_forward.20} parent=0 // pred_check_branch
    %106 = sbr.rel (0) target = $region17
  $region16: #{resnet_fpn3_forward.20} parent=0 // pred_region
    _
  $region17: #{resnet_fpn3_forward.20} parent=0 // pred_fallthru
    _
  // Predicated region
  $region18: #{resnet_fpn3_forward.20} parent=0 // pred_check
    _
  $region19: #{resnet_fpn3_forward.20} parent=0 // pred_check_branch
    %108 = sbr.rel (0) target = $region21
  $region20: #{resnet_fpn3_forward.20} parent=0 // pred_region
    _
  $region21: #{resnet_fpn3_forward.20} parent=0 // pred_fallthru
    _

// kernel: resnet_fpn3_forward.25
$region0: #{resnet_fpn3_forward.25}
  #allocation0 [shape = 'u32[]', space=smem, size = 0x4, offset = 0x4, fixed_abs, tag = 'smem constant byte address 0x4 - core index']
  #allocation1 [shape = 'u32[144,128]{1,0:T(1,128)}', space=vmem, size = 0x12000, scoped, tag = 'internal scratch']
  %s0 = inlined_call_operand.vmem [shape: f32[72,4], index: 0, kind: input, shape index: {}]
  %s1 = inlined_call_operand.vmem [shape: f32[4,128], index: 1, kind: input, shape index: {}]
  %s2 = inlined_call_operand.vmem [shape: f32[72,128], index: 2, kind: output, shape index: {}]
  %s3 = sld [smem:[#allocation0]]
  $region18: #{resnet_fpn3_forward.25} parent=0
    _
  %s5 = ssub.s32 1, %s3
  %s6 = scalar_select 0, %s5, %s3
  // Predicated region
  $region2: #{resnet_fpn3_forward.25} parent=0 // pred_check
    _
  $region3: #{resnet_fpn3_forward.25} parent=0 // pred_check_branch
    %8 = sbr.rel (0) target = $region5
  $region4: #{resnet_fpn3_forward.25} parent=0 // pred_region
    _
  $region5: #{resnet_fpn3_forward.25} parent=0 // pred_fallthru
    _
  // Predicated region
  $region6: #{resnet_fpn3_forward.25} parent=0 // pred_check
    _
  $region7: #{resnet_fpn3_forward.25} parent=0 // pred_check_branch
    %10 = sbr.rel (0) target = $region9
  $region8: #{resnet_fpn3_forward.25} parent=0 // pred_region
    _
  $region9: #{resnet_fpn3_forward.25} parent=0 // pred_fallthru
    _
  %v11 = vld [vmem:[%s0] sm:$0xff]
  %v12 = vld [vmem:[%s0 + $0x8] sm:$0xff]
  %v13 = vld [vmem:[%s0 + $0x10] sm:$0xff]
  %v14 = vld [vmem:[%s0 + $0x18] sm:$0xff]
  %v15 = vld [vmem:[%s0 + $0x20] sm:$0xff]
  %v16 = vld [vmem:[%s0 + $0x28] sm:$0xff]
  %v17 = vld [vmem:[%s0 + $0x30] sm:$0xff]
  %v18 = vld [vmem:[%s0 + $0x38] sm:$0xff]
  %v19 = vld [vmem:[%s0 + $0x40] sm:$0xff]
  %v20 = vld [vmem:[%s1] sm:$0xf]
  %vm21 = vcmask 31744
  %v23 = vsel %vm21, %v11, 0
  %v26 = vsel %vm21, %v12, 0
  %v29 = vsel %vm21, %v13, 0
  %v32 = vsel %vm21, %v14, 0
  %v35 = vsel %vm21, %v15, 0
  %v38 = vsel %vm21, %v16, 0
  %v41 = vsel %vm21, %v17, 0
  %v44 = vsel %vm21, %v18, 0
  %v47 = vsel %vm21, %v19, 0
  %vm49 = vcmask 1043456
  %v51 = vsel %vm49, %v20, 0
  %53 = vmatprep.subr.mxu0 0.0
  %54 = vmatpush1.msra.mxu0 %v51
  %55 = vmatprep.subr.mxu0 0.0
  %56 = vmatpush1.msra.mxu0 0.0
  %57 = vmatprep.subr.mxu0 0.0
  %58 = vmatpush1.msra.mxu0 0.0
  %59 = vmatprep.subr.mxu0 0.0
  %60 = vmatpush1.msra.mxu0 0.0
  %61 = vmatprep.subr.mxu0 0.0
  %62 = vmatpush1.msra.mxu0 0.0
  %63 = vmatprep.subr.mxu0 0.0
  %64 = vmatpush1.msra.mxu0 0.0
  %65 = vmatprep.subr.mxu0 0.0
  %66 = vmatpush1.msra.mxu0 0.0
  %67 = vmatprep.subr.mxu0 0.0
  %68 = vmatpush1.msra.mxu0 0.0
  %69 = vmatprep.subr.mxu0 0.0
  %70 = vmatpush1.msra.mxu0 0.0
  %71 = vmatprep.subr.mxu0 0.0
  %72 = vmatpush1.msra.mxu0 0.0
  %73 = vmatprep.subr.mxu0 0.0
  %74 = vmatpush1.msra.mxu0 0.0
  %75 = vmatprep.subr.mxu0 0.0
  %76 = vmatpush1.msra.mxu0 0.0
  %77 = vmatprep.subr.mxu0 0.0
  %78 = vmatpush1.msra.mxu0 0.0
  %79 = vmatprep.subr.mxu0 0.0
  %80 = vmatpush1.msra.mxu0 0.0
  %81 = vmatprep.subr.mxu0 0.0
  %82 = vmatpush1.msra.mxu0 0.0
  %83 = vmatprep.subr.mxu0 0.0
  %84 = vmatpush1.msra.mxu0 0.0
  %85 = vmatprep.subr.mxu0 0.0
  %86 = vmatpush1.msra.mxu0 0.0
  %87 = vmatprep.subr.mxu0 0.0
  %88 = vmatpush1.msra.mxu0 0.0
  %89 = vmatprep.subr.mxu0 0.0
  %90 = vmatpush1.msra.mxu0 0.0
  %91 = vmatprep.subr.mxu0 0.0
  %92 = vmatpush1.msra.mxu0 0.0
  %93 = vmatprep.subr.mxu0 0.0
  %94 = vmatpush1.msra.mxu0 0.0
  %95 = vmatprep.subr.mxu0 0.0
  %96 = vmatpush1.msra.mxu0 0.0
  %97 = vmatprep.subr.mxu0 0.0
  %98 = vmatpush1.msra.mxu0 0.0
  %99 = vmatprep.subr.mxu0 0.0
  %100 = vmatpush1.msra.mxu0 0.0
  %101 = vmatprep.subr.mxu0 0.0
  %102 = vmatpush1.msra.mxu0 0.0
  %103 = vmatprep.subr.mxu0 0.0
  %104 = vmatpush1.msra.mxu0 0.0
  %105 = vmatprep.subr.mxu0 0.0
  %106 = vmatpush1.msra.mxu0 0.0
  %107 = vmatprep.subr.mxu0 0.0
  %108 = vmatpush1.msra.mxu0 0.0
  %109 = vmatprep.subr.mxu0 0.0
  %110 = vmatpush1.msra.mxu0 0.0
  %111 = vmatprep.subr.mxu0 0.0
  %112 = vmatpush1.msra.mxu0 0.0
  %113 = vmatprep.subr.mxu0 0.0
  %114 = vmatpush1.msra.mxu0 0.0
  %115 = vmatprep.subr.mxu0 0.0
  %116 = vmatpush1.msra.mxu0 0.0
  %117 = vmatprep.mubr.f32.mxu0 0.0
  %118 = vmatmul.mubr.f32.gmra.mrb[0].mxu0 %v23
  %v119 = vpop.f32.mrb[0].mxu0
  %v120 = vadd.f32 0.0, %v119
  %v121 = vpop.f32.mrb[0].mxu0
  %122 = vmatprep.mubr.f32.mxu0 0.0
  %123 = vmatmul.mubr.f32.gmra.mrb[0].mxu0 %v26
  %v124 = vpop.f32.mrb[0].mxu0
  %v125 = vadd.f32 0.0, %v124
  %v126 = vpop.f32.mrb[0].mxu0
  %127 = vmatprep.mubr.f32.mxu0 0.0
  %128 = vmatmul.mubr.f32.gmra.mrb[0].mxu0 %v29
  %v129 = vpop.f32.mrb[0].mxu0
  %v130 = vadd.f32 0.0, %v129
  %v131 = vpop.f32.mrb[0].mxu0
  %132 = vmatprep.mubr.f32.mxu0 0.0
  %133 = vmatmul.mubr.f32.gmra.mrb[0].mxu0 %v32
  %v134 = vpop.f32.mrb[0].mxu0
  %v135 = vadd.f32 0.0, %v134
  %v136 = vpop.f32.mrb[0].mxu0
  %137 = vmatprep.mubr.f32.mxu0 0.0
  %138 = vmatmul.mubr.f32.gmra.mrb[0].mxu0 %v35
  %v139 = vpop.f32.mrb[0].mxu0
  %v140 = vadd.f32 0.0, %v139
  %v141 = vpop.f32.mrb[0].mxu0
  %142 = vmatprep.mubr.f32.mxu0 0.0
  %143 = vmatmul.mubr.f32.gmra.mrb[0].mxu0 %v38
  %v144 = vpop.f32.mrb[0].mxu0
  %v145 = vadd.f32 0.0, %v144
  %v146 = vpop.f32.mrb[0].mxu0
  %147 = vmatprep.mubr.f32.mxu0 0.0
  %148 = vmatmul.mubr.f32.gmra.mrb[0].mxu0 %v41
  %v149 = vpop.f32.mrb[0].mxu0
  %v150 = vadd.f32 0.0, %v149
  %v151 = vpop.f32.mrb[0].mxu0
  %152 = vmatprep.mubr.f32.mxu0 0.0
  %153 = vmatmul.mubr.f32.gmra.mrb[0].mxu0 %v44
  %v154 = vpop.f32.mrb[0].mxu0
  %v155 = vadd.f32 0.0, %v154
  %v156 = vpop.f32.mrb[0].mxu0
  %157 = vmatprep.mubr.f32.mxu0 0.0
  %158 = vmatmul.mubr.f32.gmra.mrb[0].mxu0 %v47
  %v159 = vpop.f32.mrb[0].mxu0
  %v160 = vadd.f32 0.0, %v159
  %v161 = vpop.f32.mrb[0].mxu0
  %162 = vdwg.mxu0
  %163 = vst [vmem:[%s2] sm:$0xff] %v120
  %164 = vst [vmem:[%s2 + $0x8] sm:$0xff] %v125
  %165 = vst [vmem:[%s2 + $0x10] sm:$0xff] %v130
  %166 = vst [vmem:[%s2 + $0x18] sm:$0xff] %v135
  %167 = vst [vmem:[%s2 + $0x20] sm:$0xff] %v140
  %168 = vst [vmem:[%s2 + $0x28] sm:$0xff] %v145
  %169 = vst [vmem:[%s2 + $0x30] sm:$0xff] %v150
  %170 = vst [vmem:[%s2 + $0x38] sm:$0xff] %v155
  %171 = vst [vmem:[%s2 + $0x40] sm:$0xff] %v160
  // Predicated region
  $region10: #{resnet_fpn3_forward.25} parent=0 // pred_check
    _
  $region11: #{resnet_fpn3_forward.25} parent=0 // pred_check_branch
    %173 = sbr.rel (0) target = $region13
  $region12: #{resnet_fpn3_forward.25} parent=0 // pred_region
    _
  $region13: #{resnet_fpn3_forward.25} parent=0 // pred_fallthru
    _
  // Predicated region
  $region14: #{resnet_fpn3_forward.25} parent=0 // pred_check
    _
  $region15: #{resnet_fpn3_forward.25} parent=0 // pred_check_branch
    %175 = sbr.rel (0) target = $region17
  $region16: #{resnet_fpn3_forward.25} parent=0 // pred_region
    _
  $region17: #{resnet_fpn3_forward.25} parent=0 // pred_fallthru
    _

// kernel: resnet_fpn3_forward.22
$region0: #{resnet_fpn3_forward.22}
  #allocation0 [shape = 'u32[]', space=smem, size = 0x4, offset = 0x4, fixed_abs, tag = 'smem constant byte address 0x4 - core index']
  #allocation1 [shape = 'u32[144,128]{1,0:T(1,128)}', space=vmem, size = 0x12000, scoped, tag = 'internal scratch']
  %s0 = inlined_call_operand.vmem [shape: f32[4,36], index: 0, kind: input, shape index: {}]
  %s1 = inlined_call_operand.vmem [shape: f32[36,128], index: 1, kind: input, shape index: {}]
  %s2 = inlined_call_operand.vmem [shape: f32[4,1], index: 2, kind: input, shape index: {}]
  %s3 = inlined_call_operand.vmem [shape: f32[4,128], index: 3, kind: input, shape index: {}]
  %s4 = inlined_call_operand.vmem [shape: f32[4,128], index: 4, kind: output, shape index: {}]
  %s5 = sld [smem:[#allocation0]]
  $region26: #{resnet_fpn3_forward.22} parent=0
    _
  %s7 = ssub.s32 1, %s5
  %s8 = scalar_select 0, %s7, %s5
  // Predicated region
  $region2: #{resnet_fpn3_forward.22} parent=0 // pred_check
    _
  $region3: #{resnet_fpn3_forward.22} parent=0 // pred_check_branch
    %10 = sbr.rel (0) target = $region5
  $region4: #{resnet_fpn3_forward.22} parent=0 // pred_region
    _
  $region5: #{resnet_fpn3_forward.22} parent=0 // pred_fallthru
    _
  // Predicated region
  $region6: #{resnet_fpn3_forward.22} parent=0 // pred_check
    _
  $region7: #{resnet_fpn3_forward.22} parent=0 // pred_check_branch
    %12 = sbr.rel (0) target = $region9
  $region8: #{resnet_fpn3_forward.22} parent=0 // pred_region
    _
  $region9: #{resnet_fpn3_forward.22} parent=0 // pred_fallthru
    _
  // Predicated region
  $region10: #{resnet_fpn3_forward.22} parent=0 // pred_check
    _
  $region11: #{resnet_fpn3_forward.22} parent=0 // pred_check_branch
    %14 = sbr.rel (0) target = $region13
  $region12: #{resnet_fpn3_forward.22} parent=0 // pred_region
    _
  $region13: #{resnet_fpn3_forward.22} parent=0 // pred_fallthru
    _
  // Predicated region
  $region14: #{resnet_fpn3_forward.22} parent=0 // pred_check
    _
  $region15: #{resnet_fpn3_forward.22} parent=0 // pred_check_branch
    %16 = sbr.rel (0) target = $region17
  $region16: #{resnet_fpn3_forward.22} parent=0 // pred_region
    _
  $region17: #{resnet_fpn3_forward.22} parent=0 // pred_fallthru
    _
  %v17 = vld [vmem:[%s0] sm:$0xf]
  %v18 = vld [vmem:[%s1] sm:$0xff]
  %v19 = vld [vmem:[%s1 + $0x8] sm:$0xff]
  %v20 = vld [vmem:[%s1 + $0x10] sm:$0xff]
  %v21 = vld [vmem:[%s1 + $0x18] sm:$0xff]
  %v22 = vld [vmem:[%s1 + $0x20] sm:$0xf]
  %v23 = vld [vmem:[%s2] sm:$0xf]
  %25 = vset.pattern.permute.xlu0 0
  %26 = vperm.xlu0 %25, %v23
  %v27 = vpop.permute.xlu0 %26
  %vm29 = vcmask 293888
  %v31 = vsel %vm29, %v17, 0
  %vm33 = vcmask 1043456
  %v35 = vsel %vm33, %v22, 0
  %37 = vmatprep.subr.mxu0 0.0
  %38 = vmatpush1.msra.mxu0 %v18
  %39 = vmatprep.subr.mxu0 0.0
  %40 = vmatpush1.msra.mxu0 %v19
  %41 = vmatprep.subr.mxu0 0.0
  %42 = vmatpush1.msra.mxu0 %v20
  %43 = vmatprep.subr.mxu0 0.0
  %44 = vmatpush1.msra.mxu0 %v21
  %45 = vmatprep.subr.mxu0 0.0
  %46 = vmatpush1.msra.mxu0 %v35
  %47 = vmatprep.subr.mxu0 0.0
  %48 = vmatpush1.msra.mxu0 0.0
  %49 = vmatprep.subr.mxu0 0.0
  %50 = vmatpush1.msra.mxu0 0.0
  %51 = vmatprep.subr.mxu0 0.0
  %52 = vmatpush1.msra.mxu0 0.0
  %53 = vmatprep.subr.mxu0 0.0
  %54 = vmatpush1.msra.mxu0 0.0
  %55 = vmatprep.subr.mxu0 0.0
  %56 = vmatpush1.msra.mxu0 0.0
  %57 = vmatprep.subr.mxu0 0.0
  %58 = vmatpush1.msra.mxu0 0.0
  %59 = vmatprep.subr.mxu0 0.0
  %60 = vmatpush1.msra.mxu0 0.0
  %61 = vmatprep.subr.mxu0 0.0
  %62 = vmatpush1.msra.mxu0 0.0
  %63 = vmatprep.subr.mxu0 0.0
  %64 = vmatpush1.msra.mxu0 0.0
  %65 = vmatprep.subr.mxu0 0.0
  %66 = vmatpush1.msra.mxu0 0.0
  %67 = vmatprep.subr.mxu0 0.0
  %68 = vmatpush1.msra.mxu0 0.0
  %69 = vmatprep.subr.mxu0 0.0
  %70 = vmatpush1.msra.mxu0 0.0
  %71 = vmatprep.subr.mxu0 0.0
  %72 = vmatpush1.msra.mxu0 0.0
  %73 = vmatprep.subr.mxu0 0.0
  %74 = vmatpush1.msra.mxu0 0.0
  %75 = vmatprep.subr.mxu0 0.0
  %76 = vmatpush1.msra.mxu0 0.0
  %77 = vmatprep.subr.mxu0 0.0
  %78 = vmatpush1.msra.mxu0 0.0
  %79 = vmatprep.subr.mxu0 0.0
  %80 = vmatpush1.msra.mxu0 0.0
  %81 = vmatprep.subr.mxu0 0.0
  %82 = vmatpush1.msra.mxu0 0.0
  %83 = vmatprep.subr.mxu0 0.0
  %84 = vmatpush1.msra.mxu0 0.0
  %85 = vmatprep.subr.mxu0 0.0
  %86 = vmatpush1.msra.mxu0 0.0
  %87 = vmatprep.subr.mxu0 0.0
  %88 = vmatpush1.msra.mxu0 0.0
  %89 = vmatprep.subr.mxu0 0.0
  %90 = vmatpush1.msra.mxu0 0.0
  %91 = vmatprep.subr.mxu0 0.0
  %92 = vmatpush1.msra.mxu0 0.0
  %93 = vmatprep.subr.mxu0 0.0
  %94 = vmatpush1.msra.mxu0 0.0
  %95 = vmatprep.subr.mxu0 0.0
  %96 = vmatpush1.msra.mxu0 0.0
  %97 = vmatprep.subr.mxu0 0.0
  %98 = vmatpush1.msra.mxu0 0.0
  %99 = vmatprep.subr.mxu0 0.0
  %100 = vmatpush1.msra.mxu0 0.0
  %101 = vmatprep.mubr.f32.mxu0 0.0
  %102 = vmatmul.mubr.f32.gmra.mrb[0].mxu0 %v31
  %v103 = vpop.f32.mrb[0].mxu0
  %v104 = vadd.f32 %v27, %v103
  %v105 = vpop.f32.mrb[0].mxu0
  %106 = vdwg.mxu0
  %v107 = vld [vmem:[%s3] sm:$0xf]
  %v108 = vadd.f32 %v104, %v107
  %109 = vst [vmem:[%s4] sm:$0xf] %v108
  // Predicated region
  $region18: #{resnet_fpn3_forward.22} parent=0 // pred_check
    _
  $region19: #{resnet_fpn3_forward.22} parent=0 // pred_check_branch
    %111 = sbr.rel (0) target = $region21
  $region20: #{resnet_fpn3_forward.22} parent=0 // pred_region
    _
  $region21: #{resnet_fpn3_forward.22} parent=0 // pred_fallthru
    _
  // Predicated region
  $region22: #{resnet_fpn3_forward.22} parent=0 // pred_check
    _
  $region23: #{resnet_fpn3_forward.22} parent=0 // pred_check_branch
    %113 = sbr.rel (0) target = $region25
  $region24: #{resnet_fpn3_forward.22} parent=0 // pred_region
    _
  $region25: #{resnet_fpn3_forward.22} parent=0 // pred_fallthru
    _

// kernel: resnet_fpn3_forward.26
$region0: #{resnet_fpn3_forward.26}
  #allocation0 [shape = 'u32[]', space=smem, size = 0x4, offset = 0x4, fixed_abs, tag = 'smem constant byte address 0x4 - core index']
  #allocation1 [shape = 'u32[144,128]{1,0:T(1,128)}', space=vmem, size = 0x12000, scoped, tag = 'internal scratch']
  %s0 = inlined_call_operand.vmem [shape: f32[8,36], index: 0, kind: input, shape index: {}]
  %s1 = inlined_call_operand.vmem [shape: f32[36,32], index: 1, kind: input, shape index: {}]
  %s2 = inlined_call_operand.vmem [shape: f32[8,1], index: 2, kind: input, shape index: {}]
  %s3 = inlined_call_operand.vmem [shape: f32[8,32], index: 3, kind: output, shape index: {}]
  %s4 = sld [smem:[#allocation0]]
  $region22: #{resnet_fpn3_forward.26} parent=0
    _
  %s6 = ssub.s32 1, %s4
  %s7 = scalar_select 0, %s6, %s4
  // Predicated region
  $region2: #{resnet_fpn3_forward.26} parent=0 // pred_check
    _
  $region3: #{resnet_fpn3_forward.26} parent=0 // pred_check_branch
    %9 = sbr.rel (0) target = $region5
  $region4: #{resnet_fpn3_forward.26} parent=0 // pred_region
    _
  $region5: #{resnet_fpn3_forward.26} parent=0 // pred_fallthru
    _
  // Predicated region
  $region6: #{resnet_fpn3_forward.26} parent=0 // pred_check
    _
  $region7: #{resnet_fpn3_forward.26} parent=0 // pred_check_branch
    %11 = sbr.rel (0) target = $region9
  $region8: #{resnet_fpn3_forward.26} parent=0 // pred_region
    _
  $region9: #{resnet_fpn3_forward.26} parent=0 // pred_fallthru
    _
  // Predicated region
  $region10: #{resnet_fpn3_forward.26} parent=0 // pred_check
    _
  $region11: #{resnet_fpn3_forward.26} parent=0 // pred_check_branch
    %13 = sbr.rel (0) target = $region13
  $region12: #{resnet_fpn3_forward.26} parent=0 // pred_region
    _
  $region13: #{resnet_fpn3_forward.26} parent=0 // pred_fallthru
    _
  %v14 = vld [vmem:[%s0] sm:$0xff]
  %v15 = vld [vmem:[%s1] sm:$0xff]
  %v16 = vld [vmem:[%s1 + $0x8] sm:$0xff]
  %v17 = vld [vmem:[%s1 + $0x10] sm:$0xff]
  %v18 = vld [vmem:[%s1 + $0x18] sm:$0xff]
  %v19 = vld [vmem:[%s1 + $0x20] sm:$0xf]
  %v20 = vld [vmem:[%s2] sm:$0xff]
  %22 = vset.pattern.permute.xlu0 0
  %23 = vperm.xlu0 %22, %v20
  %v24 = vpop.permute.xlu0 %23
  %vm26 = vcmask 293888
  %v28 = vsel %vm26, %v14, 0
  %vm30 = vcmask 1043456
  %v32 = vsel %vm30, %v19, 0
  %34 = vmatprep.subr.mxu0 0.0
  %35 = vmatpush1.msra.mxu0 %v15
  %36 = vmatprep.subr.mxu0 0.0
  %37 = vmatpush1.msra.mxu0 %v16
  %38 = vmatprep.subr.mxu0 0.0
  %39 = vmatpush1.msra.mxu0 %v17
  %40 = vmatprep.subr.mxu0 0.0
  %41 = vmatpush1.msra.mxu0 %v18
  %42 = vmatprep.subr.mxu0 0.0
  %43 = vmatpush1.msra.mxu0 %v32
  %44 = vmatprep.subr.mxu0 0.0
  %45 = vmatpush1.msra.mxu0 0.0
  %46 = vmatprep.subr.mxu0 0.0
  %47 = vmatpush1.msra.mxu0 0.0
  %48 = vmatprep.subr.mxu0 0.0
  %49 = vmatpush1.msra.mxu0 0.0
  %50 = vmatprep.subr.mxu0 0.0
  %51 = vmatpush1.msra.mxu0 0.0
  %52 = vmatprep.subr.mxu0 0.0
  %53 = vmatpush1.msra.mxu0 0.0
  %54 = vmatprep.subr.mxu0 0.0
  %55 = vmatpush1.msra.mxu0 0.0
  %56 = vmatprep.subr.mxu0 0.0
  %57 = vmatpush1.msra.mxu0 0.0
  %58 = vmatprep.subr.mxu0 0.0
  %59 = vmatpush1.msra.mxu0 0.0
  %60 = vmatprep.subr.mxu0 0.0
  %61 = vmatpush1.msra.mxu0 0.0
  %62 = vmatprep.subr.mxu0 0.0
  %63 = vmatpush1.msra.mxu0 0.0
  %64 = vmatprep.subr.mxu0 0.0
  %65 = vmatpush1.msra.mxu0 0.0
  %66 = vmatprep.subr.mxu0 0.0
  %67 = vmatpush1.msra.mxu0 0.0
  %68 = vmatprep.subr.mxu0 0.0
  %69 = vmatpush1.msra.mxu0 0.0
  %70 = vmatprep.subr.mxu0 0.0
  %71 = vmatpush1.msra.mxu0 0.0
  %72 = vmatprep.subr.mxu0 0.0
  %73 = vmatpush1.msra.mxu0 0.0
  %74 = vmatprep.subr.mxu0 0.0
  %75 = vmatpush1.msra.mxu0 0.0
  %76 = vmatprep.subr.mxu0 0.0
  %77 = vmatpush1.msra.mxu0 0.0
  %78 = vmatprep.subr.mxu0 0.0
  %79 = vmatpush1.msra.mxu0 0.0
  %80 = vmatprep.subr.mxu0 0.0
  %81 = vmatpush1.msra.mxu0 0.0
  %82 = vmatprep.subr.mxu0 0.0
  %83 = vmatpush1.msra.mxu0 0.0
  %84 = vmatprep.subr.mxu0 0.0
  %85 = vmatpush1.msra.mxu0 0.0
  %86 = vmatprep.subr.mxu0 0.0
  %87 = vmatpush1.msra.mxu0 0.0
  %88 = vmatprep.subr.mxu0 0.0
  %89 = vmatpush1.msra.mxu0 0.0
  %90 = vmatprep.subr.mxu0 0.0
  %91 = vmatpush1.msra.mxu0 0.0
  %92 = vmatprep.subr.mxu0 0.0
  %93 = vmatpush1.msra.mxu0 0.0
  %94 = vmatprep.subr.mxu0 0.0
  %95 = vmatpush1.msra.mxu0 0.0
  %96 = vmatprep.subr.mxu0 0.0
  %97 = vmatpush1.msra.mxu0 0.0
  %98 = vmatprep.mubr.f32.mxu0 0.0
  %99 = vmatmul.mubr.f32.gmra.mrb[0].mxu0 %v28
  %v100 = vpop.f32.mrb[0].mxu0
  %v101 = vadd.f32 %v24, %v100
  %v102 = vpop.f32.mrb[0].mxu0
  %103 = vdwg.mxu0
  %vm104 = vcmask 261120
  %105 = vst.msk [vmem:[%s3] sm:$0xff] %vm104, %v101
  // Predicated region
  $region14: #{resnet_fpn3_forward.26} parent=0 // pred_check
    _
  $region15: #{resnet_fpn3_forward.26} parent=0 // pred_check_branch
    %107 = sbr.rel (0) target = $region17
  $region16: #{resnet_fpn3_forward.26} parent=0 // pred_region
    _
  $region17: #{resnet_fpn3_forward.26} parent=0 // pred_fallthru
    _
  // Predicated region
  $region18: #{resnet_fpn3_forward.26} parent=0 // pred_check
    _
  $region19: #{resnet_fpn3_forward.26} parent=0 // pred_check_branch
    %109 = sbr.rel (0) target = $region21
  $region20: #{resnet_fpn3_forward.26} parent=0 // pred_region
    _
  $region21: #{resnet_fpn3_forward.26} parent=0 // pred_fallthru
    _

// kernel: resnet_fpn3_forward.28
$region0: #{resnet_fpn3_forward.28}
  #allocation0 [shape = 'u32[]', space=smem, size = 0x4, offset = 0x4, fixed_abs, tag = 'smem constant byte address 0x4 - core index']
  #allocation1 [shape = 'u32[144,128]{1,0:T(1,128)}', space=vmem, size = 0x12000, scoped, tag = 'internal scratch']
  %s0 = inlined_call_operand.vmem [shape: f32[8,72], index: 0, kind: input, shape index: {}]
  %s1 = inlined_call_operand.vmem [shape: f32[72,32], index: 1, kind: input, shape index: {}]
  %s2 = inlined_call_operand.vmem [shape: f32[8,1], index: 2, kind: input, shape index: {}]
  %s3 = inlined_call_operand.vmem [shape: f32[8,32], index: 3, kind: input, shape index: {}]
  %s4 = inlined_call_operand.vmem [shape: f32[8,32], index: 4, kind: output, shape index: {}]
  %s5 = sld [smem:[#allocation0]]
  $region26: #{resnet_fpn3_forward.28} parent=0
    _
  %s7 = ssub.s32 1, %s5
  %s8 = scalar_select 0, %s7, %s5
  // Predicated region
  $region2: #{resnet_fpn3_forward.28} parent=0 // pred_check
    _
  $region3: #{resnet_fpn3_forward.28} parent=0 // pred_check_branch
    %10 = sbr.rel (0) target = $region5
  $region4: #{resnet_fpn3_forward.28} parent=0 // pred_region
    _
  $region5: #{resnet_fpn3_forward.28} parent=0 // pred_fallthru
    _
  // Predicated region
  $region6: #{resnet_fpn3_forward.28} parent=0 // pred_check
    _
  $region7: #{resnet_fpn3_forward.28} parent=0 // pred_check_branch
    %12 = sbr.rel (0) target = $region9
  $region8: #{resnet_fpn3_forward.28} parent=0 // pred_region
    _
  $region9: #{resnet_fpn3_forward.28} parent=0 // pred_fallthru
    _
  // Predicated region
  $region10: #{resnet_fpn3_forward.28} parent=0 // pred_check
    _
  $region11: #{resnet_fpn3_forward.28} parent=0 // pred_check_branch
    %14 = sbr.rel (0) target = $region13
  $region12: #{resnet_fpn3_forward.28} parent=0 // pred_region
    _
  $region13: #{resnet_fpn3_forward.28} parent=0 // pred_fallthru
    _
  // Predicated region
  $region14: #{resnet_fpn3_forward.28} parent=0 // pred_check
    _
  $region15: #{resnet_fpn3_forward.28} parent=0 // pred_check_branch
    %16 = sbr.rel (0) target = $region17
  $region16: #{resnet_fpn3_forward.28} parent=0 // pred_region
    _
  $region17: #{resnet_fpn3_forward.28} parent=0 // pred_fallthru
    _
  %v17 = vld [vmem:[%s0] sm:$0xff]
  %v18 = vld [vmem:[%s1] sm:$0xff]
  %v19 = vld [vmem:[%s1 + $0x8] sm:$0xff]
  %v20 = vld [vmem:[%s1 + $0x10] sm:$0xff]
  %v21 = vld [vmem:[%s1 + $0x18] sm:$0xff]
  %v22 = vld [vmem:[%s1 + $0x20] sm:$0xff]
  %v23 = vld [vmem:[%s1 + $0x28] sm:$0xff]
  %v24 = vld [vmem:[%s1 + $0x30] sm:$0xff]
  %v25 = vld [vmem:[%s1 + $0x38] sm:$0xff]
  %v26 = vld [vmem:[%s1 + $0x40] sm:$0xff]
  %v27 = vld [vmem:[%s2] sm:$0xff]
  %29 = vset.pattern.permute.xlu0 0
  %30 = vperm.xlu0 %29, %v27
  %v31 = vpop.permute.xlu0 %30
  %vm33 = vcmask 588800
  %v35 = vsel %vm33, %v17, 0
  %37 = vmatprep.subr.mxu0 0.0
  %38 = vmatpush1.msra.mxu0 %v18
  %39 = vmatprep.subr.mxu0 0.0
  %40 = vmatpush1.msra.mxu0 %v19
  %41 = vmatprep.subr.mxu0 0.0
  %42 = vmatpush1.msra.mxu0 %v20
  %43 = vmatprep.subr.mxu0 0.0
  %44 = vmatpush1.msra.mxu0 %v21
  %45 = vmatprep.subr.mxu0 0.0
  %46 = vmatpush1.msra.mxu0 %v22
  %47 = vmatprep.subr.mxu0 0.0
  %48 = vmatpush1.msra.mxu0 %v23
  %49 = vmatprep.subr.mxu0 0.0
  %50 = vmatpush1.msra.mxu0 %v24
  %51 = vmatprep.subr.mxu0 0.0
  %52 = vmatpush1.msra.mxu0 %v25
  %53 = vmatprep.subr.mxu0 0.0
  %54 = vmatpush1.msra.mxu0 %v26
  %55 = vmatprep.subr.mxu0 0.0
  %56 = vmatpush1.msra.mxu0 0.0
  %57 = vmatprep.subr.mxu0 0.0
  %58 = vmatpush1.msra.mxu0 0.0
  %59 = vmatprep.subr.mxu0 0.0
  %60 = vmatpush1.msra.mxu0 0.0
  %61 = vmatprep.subr.mxu0 0.0
  %62 = vmatpush1.msra.mxu0 0.0
  %63 = vmatprep.subr.mxu0 0.0
  %64 = vmatpush1.msra.mxu0 0.0
  %65 = vmatprep.subr.mxu0 0.0
  %66 = vmatpush1.msra.mxu0 0.0
  %67 = vmatprep.subr.mxu0 0.0
  %68 = vmatpush1.msra.mxu0 0.0
  %69 = vmatprep.subr.mxu0 0.0
  %70 = vmatpush1.msra.mxu0 0.0
  %71 = vmatprep.subr.mxu0 0.0
  %72 = vmatpush1.msra.mxu0 0.0
  %73 = vmatprep.subr.mxu0 0.0
  %74 = vmatpush1.msra.mxu0 0.0
  %75 = vmatprep.subr.mxu0 0.0
  %76 = vmatpush1.msra.mxu0 0.0
  %77 = vmatprep.subr.mxu0 0.0
  %78 = vmatpush1.msra.mxu0 0.0
  %79 = vmatprep.subr.mxu0 0.0
  %80 = vmatpush1.msra.mxu0 0.0
  %81 = vmatprep.subr.mxu0 0.0
  %82 = vmatpush1.msra.mxu0 0.0
  %83 = vmatprep.subr.mxu0 0.0
  %84 = vmatpush1.msra.mxu0 0.0
  %85 = vmatprep.subr.mxu0 0.0
  %86 = vmatpush1.msra.mxu0 0.0
  %87 = vmatprep.subr.mxu0 0.0
  %88 = vmatpush1.msra.mxu0 0.0
  %89 = vmatprep.subr.mxu0 0.0
  %90 = vmatpush1.msra.mxu0 0.0
  %91 = vmatprep.subr.mxu0 0.0
  %92 = vmatpush1.msra.mxu0 0.0
  %93 = vmatprep.subr.mxu0 0.0
  %94 = vmatpush1.msra.mxu0 0.0
  %95 = vmatprep.subr.mxu0 0.0
  %96 = vmatpush1.msra.mxu0 0.0
  %97 = vmatprep.subr.mxu0 0.0
  %98 = vmatpush1.msra.mxu0 0.0
  %99 = vmatprep.subr.mxu0 0.0
  %100 = vmatpush1.msra.mxu0 0.0
  %101 = vmatprep.mubr.f32.mxu0 0.0
  %102 = vmatmul.mubr.f32.gmra.mrb[0].mxu0 %v35
  %v103 = vpop.f32.mrb[0].mxu0
  %v104 = vadd.f32 %v31, %v103
  %v105 = vpop.f32.mrb[0].mxu0
  %106 = vdwg.mxu0
  %v107 = vld [vmem:[%s3] sm:$0xff]
  %v108 = vadd.f32 %v104, %v107
  %vm109 = vcmask 261120
  %110 = vst.msk [vmem:[%s4] sm:$0xff] %vm109, %v108
  // Predicated region
  $region18: #{resnet_fpn3_forward.28} parent=0 // pred_check
    _
  $region19: #{resnet_fpn3_forward.28} parent=0 // pred_check_branch
    %112 = sbr.rel (0) target = $region21
  $region20: #{resnet_fpn3_forward.28} parent=0 // pred_region
    _
  $region21: #{resnet_fpn3_forward.28} parent=0 // pred_fallthru
    _
  // Predicated region
  $region22: #{resnet_fpn3_forward.28} parent=0 // pred_check
    _
  $region23: #{resnet_fpn3_forward.28} parent=0 // pred_check_branch
    %114 = sbr.rel (0) target = $region25
  $region24: #{resnet_fpn3_forward.28} parent=0 // pred_region
    _
  $region25: #{resnet_fpn3_forward.28} parent=0 // pred_fallthru
    _

// kernel: resnet_fpn3_forward.27
$region0: #{resnet_fpn3_forward.27}
  #allocation0 [shape = 'u32[]', space=smem, size = 0x4, offset = 0x4, fixed_abs, tag = 'smem constant byte address 0x4 - core index']
  #allocation1 [shape = 'u32[144,128]{1,0:T(1,128)}', space=vmem, size = 0x12000, scoped, tag = 'internal scratch']
  %s0 = inlined_call_operand.vmem [shape: f32[8,72], index: 0, kind: input, shape index: {}]
  %s1 = inlined_call_operand.vmem [shape: f32[72,32], index: 1, kind: input, shape index: {}]
  %s2 = inlined_call_operand.vmem [shape: f32[8,1], index: 2, kind: input, shape index: {}]
  %s3 = inlined_call_operand.vmem [shape: f32[8,32], index: 3, kind: output, shape index: {}]
  %s4 = sld [smem:[#allocation0]]
  $region22: #{resnet_fpn3_forward.27} parent=0
    _
  %s6 = ssub.s32 1, %s4
  %s7 = scalar_select 0, %s6, %s4
  // Predicated region
  $region2: #{resnet_fpn3_forward.27} parent=0 // pred_check
    _
  $region3: #{resnet_fpn3_forward.27} parent=0 // pred_check_branch
    %9 = sbr.rel (0) target = $region5
  $region4: #{resnet_fpn3_forward.27} parent=0 // pred_region
    _
  $region5: #{resnet_fpn3_forward.27} parent=0 // pred_fallthru
    _
  // Predicated region
  $region6: #{resnet_fpn3_forward.27} parent=0 // pred_check
    _
  $region7: #{resnet_fpn3_forward.27} parent=0 // pred_check_branch
    %11 = sbr.rel (0) target = $region9
  $region8: #{resnet_fpn3_forward.27} parent=0 // pred_region
    _
  $region9: #{resnet_fpn3_forward.27} parent=0 // pred_fallthru
    _
  // Predicated region
  $region10: #{resnet_fpn3_forward.27} parent=0 // pred_check
    _
  $region11: #{resnet_fpn3_forward.27} parent=0 // pred_check_branch
    %13 = sbr.rel (0) target = $region13
  $region12: #{resnet_fpn3_forward.27} parent=0 // pred_region
    _
  $region13: #{resnet_fpn3_forward.27} parent=0 // pred_fallthru
    _
  %v14 = vld [vmem:[%s0] sm:$0xff]
  %v15 = vld [vmem:[%s1] sm:$0xff]
  %v16 = vld [vmem:[%s1 + $0x8] sm:$0xff]
  %v17 = vld [vmem:[%s1 + $0x10] sm:$0xff]
  %v18 = vld [vmem:[%s1 + $0x18] sm:$0xff]
  %v19 = vld [vmem:[%s1 + $0x20] sm:$0xff]
  %v20 = vld [vmem:[%s1 + $0x28] sm:$0xff]
  %v21 = vld [vmem:[%s1 + $0x30] sm:$0xff]
  %v22 = vld [vmem:[%s1 + $0x38] sm:$0xff]
  %v23 = vld [vmem:[%s1 + $0x40] sm:$0xff]
  %v24 = vld [vmem:[%s2] sm:$0xff]
  %26 = vset.pattern.permute.xlu0 0
  %27 = vperm.xlu0 %26, %v24
  %v28 = vpop.permute.xlu0 %27
  %vm30 = vcmask 588800
  %v32 = vsel %vm30, %v14, 0
  %34 = vmatprep.subr.mxu0 0.0
  %35 = vmatpush1.msra.mxu0 %v15
  %36 = vmatprep.subr.mxu0 0.0
  %37 = vmatpush1.msra.mxu0 %v16
  %38 = vmatprep.subr.mxu0 0.0
  %39 = vmatpush1.msra.mxu0 %v17
  %40 = vmatprep.subr.mxu0 0.0
  %41 = vmatpush1.msra.mxu0 %v18
  %42 = vmatprep.subr.mxu0 0.0
  %43 = vmatpush1.msra.mxu0 %v19
  %44 = vmatprep.subr.mxu0 0.0
  %45 = vmatpush1.msra.mxu0 %v20
  %46 = vmatprep.subr.mxu0 0.0
  %47 = vmatpush1.msra.mxu0 %v21
  %48 = vmatprep.subr.mxu0 0.0
  %49 = vmatpush1.msra.mxu0 %v22
  %50 = vmatprep.subr.mxu0 0.0
  %51 = vmatpush1.msra.mxu0 %v23
  %52 = vmatprep.subr.mxu0 0.0
  %53 = vmatpush1.msra.mxu0 0.0
  %54 = vmatprep.subr.mxu0 0.0
  %55 = vmatpush1.msra.mxu0 0.0
  %56 = vmatprep.subr.mxu0 0.0
  %57 = vmatpush1.msra.mxu0 0.0
  %58 = vmatprep.subr.mxu0 0.0
  %59 = vmatpush1.msra.mxu0 0.0
  %60 = vmatprep.subr.mxu0 0.0
  %61 = vmatpush1.msra.mxu0 0.0
  %62 = vmatprep.subr.mxu0 0.0
  %63 = vmatpush1.msra.mxu0 0.0
  %64 = vmatprep.subr.mxu0 0.0
  %65 = vmatpush1.msra.mxu0 0.0
  %66 = vmatprep.subr.mxu0 0.0
  %67 = vmatpush1.msra.mxu0 0.0
  %68 = vmatprep.subr.mxu0 0.0
  %69 = vmatpush1.msra.mxu0 0.0
  %70 = vmatprep.subr.mxu0 0.0
  %71 = vmatpush1.msra.mxu0 0.0
  %72 = vmatprep.subr.mxu0 0.0
  %73 = vmatpush1.msra.mxu0 0.0
  %74 = vmatprep.subr.mxu0 0.0
  %75 = vmatpush1.msra.mxu0 0.0
  %76 = vmatprep.subr.mxu0 0.0
  %77 = vmatpush1.msra.mxu0 0.0
  %78 = vmatprep.subr.mxu0 0.0
  %79 = vmatpush1.msra.mxu0 0.0
  %80 = vmatprep.subr.mxu0 0.0
  %81 = vmatpush1.msra.mxu0 0.0
  %82 = vmatprep.subr.mxu0 0.0
  %83 = vmatpush1.msra.mxu0 0.0
  %84 = vmatprep.subr.mxu0 0.0
  %85 = vmatpush1.msra.mxu0 0.0
  %86 = vmatprep.subr.mxu0 0.0
  %87 = vmatpush1.msra.mxu0 0.0
  %88 = vmatprep.subr.mxu0 0.0
  %89 = vmatpush1.msra.mxu0 0.0
  %90 = vmatprep.subr.mxu0 0.0
  %91 = vmatpush1.msra.mxu0 0.0
  %92 = vmatprep.subr.mxu0 0.0
  %93 = vmatpush1.msra.mxu0 0.0
  %94 = vmatprep.subr.mxu0 0.0
  %95 = vmatpush1.msra.mxu0 0.0
  %96 = vmatprep.subr.mxu0 0.0
  %97 = vmatpush1.msra.mxu0 0.0
  %98 = vmatprep.mubr.f32.mxu0 0.0
  %99 = vmatmul.mubr.f32.gmra.mrb[0].mxu0 %v32
  %v100 = vpop.f32.mrb[0].mxu0
  %v101 = vadd.f32 %v28, %v100
  %v102 = vpop.f32.mrb[0].mxu0
  %103 = vdwg.mxu0
  %vm104 = vcmask 261120
  %105 = vst.msk [vmem:[%s3] sm:$0xff] %vm104, %v101
  // Predicated region
  $region14: #{resnet_fpn3_forward.27} parent=0 // pred_check
    _
  $region15: #{resnet_fpn3_forward.27} parent=0 // pred_check_branch
    %107 = sbr.rel (0) target = $region17
  $region16: #{resnet_fpn3_forward.27} parent=0 // pred_region
    _
  $region17: #{resnet_fpn3_forward.27} parent=0 // pred_fallthru
    _
  // Predicated region
  $region18: #{resnet_fpn3_forward.27} parent=0 // pred_check
    _
  $region19: #{resnet_fpn3_forward.27} parent=0 // pred_check_branch
    %109 = sbr.rel (0) target = $region21
  $region20: #{resnet_fpn3_forward.27} parent=0 // pred_region
    _
  $region21: #{resnet_fpn3_forward.27} parent=0 // pred_fallthru
    _

// kernel: resnet_fpn3_forward.31
$region0: #{resnet_fpn3_forward.31}
  #allocation0 [shape = 'u32[]', space=smem, size = 0x4, offset = 0x4, fixed_abs, tag = 'smem constant byte address 0x4 - core index']
  #allocation1 [shape = 'u32[144,128]{1,0:T(1,128)}', space=vmem, size = 0x12000, scoped, tag = 'internal scratch']
  %s0 = inlined_call_operand.vmem [shape: f32[72,8], index: 0, kind: input, shape index: {}]
  %s1 = inlined_call_operand.vmem [shape: f32[8,32], index: 1, kind: input, shape index: {}]
  %s2 = inlined_call_operand.vmem [shape: f32[72,32], index: 2, kind: output, shape index: {}]
  %s3 = sld [smem:[#allocation0]]
  $region18: #{resnet_fpn3_forward.31} parent=0
    _
  %s5 = ssub.s32 1, %s3
  %s6 = scalar_select 0, %s5, %s3
  // Predicated region
  $region2: #{resnet_fpn3_forward.31} parent=0 // pred_check
    _
  $region3: #{resnet_fpn3_forward.31} parent=0 // pred_check_branch
    %8 = sbr.rel (0) target = $region5
  $region4: #{resnet_fpn3_forward.31} parent=0 // pred_region
    _
  $region5: #{resnet_fpn3_forward.31} parent=0 // pred_fallthru
    _
  // Predicated region
  $region6: #{resnet_fpn3_forward.31} parent=0 // pred_check
    _
  $region7: #{resnet_fpn3_forward.31} parent=0 // pred_check_branch
    %10 = sbr.rel (0) target = $region9
  $region8: #{resnet_fpn3_forward.31} parent=0 // pred_region
    _
  $region9: #{resnet_fpn3_forward.31} parent=0 // pred_fallthru
    _
  %v11 = vld [vmem:[%s0] sm:$0xff]
  %v12 = vld [vmem:[%s0 + $0x8] sm:$0xff]
  %v13 = vld [vmem:[%s0 + $0x10] sm:$0xff]
  %v14 = vld [vmem:[%s0 + $0x18] sm:$0xff]
  %v15 = vld [vmem:[%s0 + $0x20] sm:$0xff]
  %v16 = vld [vmem:[%s0 + $0x28] sm:$0xff]
  %v17 = vld [vmem:[%s0 + $0x30] sm:$0xff]
  %v18 = vld [vmem:[%s0 + $0x38] sm:$0xff]
  %v19 = vld [vmem:[%s0 + $0x40] sm:$0xff]
  %v20 = vld [vmem:[%s1] sm:$0xff]
  %vm21 = vcmask 64512
  %v23 = vsel %vm21, %v11, 0
  %v26 = vsel %vm21, %v12, 0
  %v29 = vsel %vm21, %v13, 0
  %v32 = vsel %vm21, %v14, 0
  %v35 = vsel %vm21, %v15, 0
  %v38 = vsel %vm21, %v16, 0
  %v41 = vsel %vm21, %v17, 0
  %v44 = vsel %vm21, %v18, 0
  %v47 = vsel %vm21, %v19, 0
  %49 = vmatprep.subr.mxu0 0.0
  %50 = vmatpush1.msra.mxu0 %v20
  %51 = vmatprep.subr.mxu0 0.0
  %52 = vmatpush1.msra.mxu0 0.0
  %53 = vmatprep.subr.mxu0 0.0
  %54 = vmatpush1.msra.mxu0 0.0
  %55 = vmatprep.subr.mxu0 0.0
  %56 = vmatpush1.msra.mxu0 0.0
  %57 = vmatprep.subr.mxu0 0.0
  %58 = vmatpush1.msra.mxu0 0.0
  %59 = vmatprep.subr.mxu0 0.0
  %60 = vmatpush1.msra.mxu0 0.0
  %61 = vmatprep.subr.mxu0 0.0
  %62 = vmatpush1.msra.mxu0 0.0
  %63 = vmatprep.subr.mxu0 0.0
  %64 = vmatpush1.msra.mxu0 0.0
  %65 = vmatprep.subr.mxu0 0.0
  %66 = vmatpush1.msra.mxu0 0.0
  %67 = vmatprep.subr.mxu0 0.0
  %68 = vmatpush1.msra.mxu0 0.0
  %69 = vmatprep.subr.mxu0 0.0
  %70 = vmatpush1.msra.mxu0 0.0
  %71 = vmatprep.subr.mxu0 0.0
  %72 = vmatpush1.msra.mxu0 0.0
  %73 = vmatprep.subr.mxu0 0.0
  %74 = vmatpush1.msra.mxu0 0.0
  %75 = vmatprep.subr.mxu0 0.0
  %76 = vmatpush1.msra.mxu0 0.0
  %77 = vmatprep.subr.mxu0 0.0
  %78 = vmatpush1.msra.mxu0 0.0
  %79 = vmatprep.subr.mxu0 0.0
  %80 = vmatpush1.msra.mxu0 0.0
  %81 = vmatprep.subr.mxu0 0.0
  %82 = vmatpush1.msra.mxu0 0.0
  %83 = vmatprep.subr.mxu0 0.0
  %84 = vmatpush1.msra.mxu0 0.0
  %85 = vmatprep.subr.mxu0 0.0
  %86 = vmatpush1.msra.mxu0 0.0
  %87 = vmatprep.subr.mxu0 0.0
  %88 = vmatpush1.msra.mxu0 0.0
  %89 = vmatprep.subr.mxu0 0.0
  %90 = vmatpush1.msra.mxu0 0.0
  %91 = vmatprep.subr.mxu0 0.0
  %92 = vmatpush1.msra.mxu0 0.0
  %93 = vmatprep.subr.mxu0 0.0
  %94 = vmatpush1.msra.mxu0 0.0
  %95 = vmatprep.subr.mxu0 0.0
  %96 = vmatpush1.msra.mxu0 0.0
  %97 = vmatprep.subr.mxu0 0.0
  %98 = vmatpush1.msra.mxu0 0.0
  %99 = vmatprep.subr.mxu0 0.0
  %100 = vmatpush1.msra.mxu0 0.0
  %101 = vmatprep.subr.mxu0 0.0
  %102 = vmatpush1.msra.mxu0 0.0
  %103 = vmatprep.subr.mxu0 0.0
  %104 = vmatpush1.msra.mxu0 0.0
  %105 = vmatprep.subr.mxu0 0.0
  %106 = vmatpush1.msra.mxu0 0.0
  %107 = vmatprep.subr.mxu0 0.0
  %108 = vmatpush1.msra.mxu0 0.0
  %109 = vmatprep.subr.mxu0 0.0
  %110 = vmatpush1.msra.mxu0 0.0
  %111 = vmatprep.subr.mxu0 0.0
  %112 = vmatpush1.msra.mxu0 0.0
  %113 = vmatprep.mubr.f32.mxu0 0.0
  %114 = vmatmul.mubr.f32.gmra.mrb[0].mxu0 %v23
  %v115 = vpop.f32.mrb[0].mxu0
  %v116 = vadd.f32 0.0, %v115
  %v117 = vpop.f32.mrb[0].mxu0
  %118 = vmatprep.mubr.f32.mxu0 0.0
  %119 = vmatmul.mubr.f32.gmra.mrb[0].mxu0 %v26
  %v120 = vpop.f32.mrb[0].mxu0
  %v121 = vadd.f32 0.0, %v120
  %v122 = vpop.f32.mrb[0].mxu0
  %123 = vmatprep.mubr.f32.mxu0 0.0
  %124 = vmatmul.mubr.f32.gmra.mrb[0].mxu0 %v29
  %v125 = vpop.f32.mrb[0].mxu0
  %v126 = vadd.f32 0.0, %v125
  %v127 = vpop.f32.mrb[0].mxu0
  %128 = vmatprep.mubr.f32.mxu0 0.0
  %129 = vmatmul.mubr.f32.gmra.mrb[0].mxu0 %v32
  %v130 = vpop.f32.mrb[0].mxu0
  %v131 = vadd.f32 0.0, %v130
  %v132 = vpop.f32.mrb[0].mxu0
  %133 = vmatprep.mubr.f32.mxu0 0.0
  %134 = vmatmul.mubr.f32.gmra.mrb[0].mxu0 %v35
  %v135 = vpop.f32.mrb[0].mxu0
  %v136 = vadd.f32 0.0, %v135
  %v137 = vpop.f32.mrb[0].mxu0
  %138 = vmatprep.mubr.f32.mxu0 0.0
  %139 = vmatmul.mubr.f32.gmra.mrb[0].mxu0 %v38
  %v140 = vpop.f32.mrb[0].mxu0
  %v141 = vadd.f32 0.0, %v140
  %v142 = vpop.f32.mrb[0].mxu0
  %143 = vmatprep.mubr.f32.mxu0 0.0
  %144 = vmatmul.mubr.f32.gmra.mrb[0].mxu0 %v41
  %v145 = vpop.f32.mrb[0].mxu0
  %v146 = vadd.f32 0.0, %v145
  %v147 = vpop.f32.mrb[0].mxu0
  %148 = vmatprep.mubr.f32.mxu0 0.0
  %149 = vmatmul.mubr.f32.gmra.mrb[0].mxu0 %v44
  %v150 = vpop.f32.mrb[0].mxu0
  %v151 = vadd.f32 0.0, %v150
  %v152 = vpop.f32.mrb[0].mxu0
  %153 = vmatprep.mubr.f32.mxu0 0.0
  %154 = vmatmul.mubr.f32.gmra.mrb[0].mxu0 %v47
  %v155 = vpop.f32.mrb[0].mxu0
  %v156 = vadd.f32 0.0, %v155
  %v157 = vpop.f32.mrb[0].mxu0
  %158 = vdwg.mxu0
  %vm159 = vcmask 261120
  %160 = vst.msk [vmem:[%s2] sm:$0xff] %vm159, %v116
  %161 = vst.msk [vmem:[%s2 + $0x8] sm:$0xff] %vm159, %v121
  %162 = vst.msk [vmem:[%s2 + $0x10] sm:$0xff] %vm159, %v126
  %163 = vst.msk [vmem:[%s2 + $0x18] sm:$0xff] %vm159, %v131
  %164 = vst.msk [vmem:[%s2 + $0x20] sm:$0xff] %vm159, %v136
  %165 = vst.msk [vmem:[%s2 + $0x28] sm:$0xff] %vm159, %v141
  %166 = vst.msk [vmem:[%s2 + $0x30] sm:$0xff] %vm159, %v146
  %167 = vst.msk [vmem:[%s2 + $0x38] sm:$0xff] %vm159, %v151
  %168 = vst.msk [vmem:[%s2 + $0x40] sm:$0xff] %vm159, %v156
  // Predicated region
  $region10: #{resnet_fpn3_forward.31} parent=0 // pred_check
    _
  $region11: #{resnet_fpn3_forward.31} parent=0 // pred_check_branch
    %170 = sbr.rel (0) target = $region13
  $region12: #{resnet_fpn3_forward.31} parent=0 // pred_region
    _
  $region13: #{resnet_fpn3_forward.31} parent=0 // pred_fallthru
    _
  // Predicated region
  $region14: #{resnet_fpn3_forward.31} parent=0 // pred_check
    _
  $region15: #{resnet_fpn3_forward.31} parent=0 // pred_check_branch
    %172 = sbr.rel (0) target = $region17
  $region16: #{resnet_fpn3_forward.31} parent=0 // pred_region
    _
  $region17: #{resnet_fpn3_forward.31} parent=0 // pred_fallthru
    _

</llo_original>
